<compile_context>
chip_gen: v6e
topology: v6e:2x2x1
jax: 0.10.0
libtpu: 0.0.40
codegen_flags: <defaults>
</compile_context>

<pallas_src>
import functools

import jax
import jax.numpy as jnp
from jax import lax
from jax.experimental import pallas as pl
from jax.experimental.pallas import tpu as pltpu


def _round_up(x, m):
    return ((x + m - 1) // m) * m


# ----------------------------------------------------------------------------
# Pallas kernel: multi-layer LSTM over time + concat(h, c) + tanh + fc.
# ----------------------------------------------------------------------------
def qst_encoder_kernel(x_ref, *refs, num_layers, hidden_size):
    # refs = [slab_0, ..., slab_{L-1}, fc_slab, out_ref,
    #         xw_scratch, seq_scratch, feat_scratch]
    L = num_layers
    H = hidden_size
    slab_refs = refs[:L]
    fc_ref = refs[L]
    out_ref = refs[L + 1]
    xw_ref = refs[L + 2]      # (S, B, 4H) f32 : precomputed x@W_ih + b (pre-scaled)
    seq_ref = refs[L + 3]     # (S, B, H)  f32 : current layer outputs
    feat_ref = refs[L + 4]    # (B, 2*L*H) f32 : [h0|c0|h1|c1|...]

    S, B, E = x_ref.shape

    # tanh(embedding) in f32 (v5e EUP has no bf16); bf16 only as MXU operand.
    x0 = jnp.tanh(x_ref[...].astype(jnp.float32))
    x0 = x0.reshape(S * B, E).astype(jnp.bfloat16)

    for layer in range(L):
        in_dim = E if layer == 0 else H
        slab = slab_refs[layer]                               # bf16 slab
        w_ih_t = slab[0:in_dim, :]                            # (in_dim, 4H)
        w_hh_t = slab[in_dim:in_dim + H, :]                   # (H, 4H)
        bias = slab[in_dim + H:in_dim + H + 1, :].astype(jnp.float32)  # (1, 4H)

        # --- hoisted input-to-hidden matmul + bias (one MXU shot per layer) ---
        if layer == 0:
            x_all = x0
        else:
            x_all = seq_ref[...].reshape(S * B, H).astype(jnp.bfloat16)
        xw = jnp.dot(x_all, w_ih_t, preferred_element_type=jnp.float32) + bias
        xw_ref[...] = xw.reshape(S, B, 4 * H)
        # TODO(synk): for production S*B*H on v7x, chunk this matmul over time
        # blocks (8-16 steps) and store xw_ref/seq_ref in bf16 to bound VMEM.

        is_last_layer = (layer == L - 1)

        # --- serial recurrence: one small MXU op + one tanh(4H) per step ---
        def step(t, carry, _w_hh_t=w_hh_t, _write_seq=not is_last_layer):
            h, c = carry                                      # f32 carries
            gates = xw_ref[t] + jnp.dot(
                h.astype(jnp.bfloat16), _w_hh_t,
                preferred_element_type=jnp.float32,
            )                                                 # (B, 4H); i/f/o cols pre-halved
            t_all = jnp.tanh(gates)                           # single full-width EUP pass
            sig = 0.5 * t_all + 0.5                           # sigmoid(z)=0.5*tanh(z/2)+0.5 (VALU)
            i_g = sig[:, 0 * H:1 * H]
            f_g = sig[:, 1 * H:2 * H]
            g_g = t_all[:, 2 * H:3 * H]                       # g gate columns unscaled -> tanh
            o_g = sig[:, 3 * H:4 * H]
            c_new = f_g * c + i_g * g_g
            h_new = o_g * jnp.tanh(c_new)
            if _write_seq:                                    # feed next layer
                seq_ref[t] = h_new
            return h_new, c_new

        h0 = jnp.zeros((B, H), jnp.float32)
        c0 = jnp.zeros((B, H), jnp.float32)
        # S is a small static constant -> full unroll for LLO scheduling.
        h_last, c_last = lax.fori_loop(0, S, step, (h0, c0), unroll=True)

        # Slice-write final (h, c) into the fc-input slab: [h0|c0|h1|c1|...]
        # (slices are 32-lane at H=32; keep H a multiple of 128 if ever scaled.)
        feat_ref[:, (2 * layer + 0) * H:(2 * layer + 1) * H] = h_last
        feat_ref[:, (2 * layer + 1) * H:(2 * layer + 2) * H] = c_last

    # torch: tanh(cat(hidden, cell)) then Linear.
    feature = jnp.tanh(feat_ref[...])                         # (B, 2LH), one EUP pass
    fc_w_t = fc_ref[0:2 * L * H, :]                           # (2LH, E_out_pad) bf16
    fc_b = fc_ref[2 * L * H:2 * L * H + 1, :].astype(jnp.float32)
    out = jnp.dot(feature.astype(jnp.bfloat16), fc_w_t,
                  preferred_element_type=jnp.float32) + fc_b
    out_ref[...] = out.astype(out_ref.dtype)


# ----------------------------------------------------------------------------
# One-time parameter prep: transpose, fold & pre-scale biases, pack bf16 slabs.
# ----------------------------------------------------------------------------
def prepare_params(params, *, num_layers, hidden_size, embed_size):
    H = hidden_size
    L = num_layers
    # 0.5 pre-scale on the i/f/o gate columns so the kernel recovers their
    # sigmoids from a single full-width tanh.  (Gate order in torch: i,f,g,o.)
    gate_scale = jnp.concatenate([
        jnp.full((H,), 0.5, jnp.float32),   # i
        jnp.full((H,), 0.5, jnp.float32),   # f
        jnp.full((H,), 1.0, jnp.float32),   # g
        jnp.full((H,), 0.5, jnp.float32),   # o
    ])

    prepped = {"embedding": params["embedding"], "slabs": []}
    for layer in range(L):
        w_ih, w_hh, b_ih, b_hh = params["lstm"][layer]
        slab = jnp.concatenate(
            [
                jnp.transpose(w_ih) * gate_scale,              # (in_dim, 4H)
                jnp.transpose(w_hh) * gate_scale,              # (H, 4H)
                ((b_ih + b_hh) * gate_scale).reshape(1, -1),   # (1, 4H)
            ],
            axis=0,
        ).astype(jnp.bfloat16)
        prepped["slabs"].append(slab)

    # Pad fc output dim to a multiple of 128 lanes -> lane-dense final store.
    e_pad = _round_up(embed_size, 128)
    fc_w_t = jnp.transpose(params["fc_w"])                     # (2LH, embed)
    fc_w_t = jnp.pad(fc_w_t, ((0, 0), (0, e_pad - embed_size)))
    fc_b = jnp.pad(params["fc_b"], (0, e_pad - embed_size)).reshape(1, -1)
    prepped["fc_slab"] = jnp.concatenate([fc_w_t, fc_b],
                                         axis=0).astype(jnp.bfloat16)
    prepped["embed_size_padded"] = e_pad
    return prepped


# ----------------------------------------------------------------------------
# Wrapper
# ----------------------------------------------------------------------------
def qst_encoder_pallas(question, prepped, *, num_layers, hidden_size, embed_size):
    """question: (B, S) int32 token ids."""
    B, S = question.shape
    H = hidden_size
    L = num_layers
    e_pad = prepped["embed_size_padded"]
    E = prepped["embedding"].shape[1]

    x = jnp.take(prepped["embedding"], question, axis=0)       # (B, S, E) gather (glue)
    x = jnp.transpose(x, (1, 0, 2)).astype(jnp.bfloat16)       # (S, B, E) time-major, bf16 DMA

    # Batch blocking: sublane aligned, up to 256 rows per block (fills MXU rows
    # of the recurrent matmul); grid over batch blocks -> megacore "parallel"
    # axis on v7x, DMA pipelining / bounded VMEM elsewhere.
    b_pad = _round_up(max(B, 8), 8)
    b_blk = min(b_pad, 256)
    b_pad = _round_up(b_pad, b_blk)
    if b_pad != B:
        x = jnp.pad(x, ((0, 0), (0, b_pad - B), (0, 0)))
    n_blocks = b_pad // b_blk

    kernel = functools.partial(qst_encoder_kernel, num_layers=L, hidden_size=H)

    slab_specs = [pl.BlockSpec(s.shape, lambda i: (0, 0)) for s in prepped["slabs"]]
    fc_spec = pl.BlockSpec(prepped["fc_slab"].shape, lambda i: (0, 0))

    # Explicit scoped-VMEM budget: scratches + double-buffered block I/O + weights.
    scratch_bytes = (S * b_blk * 4 * H * 4) + (S * b_blk * H * 4) + (b_blk * 2 * L * H * 4)
    io_bytes = 2 * (S * b_blk * E * 2) + 2 * (b_blk * e_pad * 4)
    w_bytes = 2 * sum(int(s.size) * 2 for s in prepped["slabs"]) \
        + 2 * int(prepped["fc_slab"].size) * 2
    vmem_limit = int(min(max(2 * (scratch_bytes + io_bytes + w_bytes), 16 * 2**20),
                         48 * 2**20))

    out = pl.pallas_call(
        kernel,
        out_shape=jax.ShapeDtypeStruct((b_pad, e_pad), jnp.float32),
        grid=(n_blocks,),
        in_specs=[pl.BlockSpec((S, b_blk, E), lambda i: (0, i, 0))]
        + slab_specs
        + [fc_spec],
        out_specs=pl.BlockSpec((b_blk, e_pad), lambda i: (i, 0)),
        scratch_shapes=[
            pltpu.VMEM((S, b_blk, 4 * H), jnp.float32),   # hoisted x@W_ih + b
            pltpu.VMEM((S, b_blk, H), jnp.float32),       # layer output sequence
            pltpu.VMEM((b_blk, 2 * L * H), jnp.float32),  # [h|c] feature slab
        ],
        compiler_params=pltpu.CompilerParams(
            dimension_semantics=("parallel",),
            vmem_limit_bytes=vmem_limit,
        ),
    )(x, *prepped["slabs"], prepped["fc_slab"])
    return out[:B, :embed_size]


# ----------------------------------------------------------------------------
# Pure-JAX reference (mirrors the PyTorch forward exactly, f32 throughout)
# ----------------------------------------------------------------------------
def qst_encoder_reference(question, params, *, num_layers, hidden_size):
    x = jnp.tanh(jnp.take(params["embedding"], question, axis=0))  # (B, S, E)
    x = jnp.transpose(x, (1, 0, 2))                                # (S, B, E)
    S, B, _ = x.shape
    H = hidden_size
    seq = [x[t] for t in range(S)]
    feats = []
    for layer in range(num_layers):
        w_ih, w_hh, b_ih, b_hh = params["lstm"][layer]
        h = jnp.zeros((B, H), jnp.float32)
        c = jnp.zeros((B, H), jnp.float32)
        outs = []
        for t in range(S):
            gates = seq[t] @ w_ih.T + h @ w_hh.T + b_ih + b_hh
            i_g = jax.nn.sigmoid(gates[:, :H])
            f_g = jax.nn.sigmoid(gates[:, H:2 * H])
            g_g = jnp.tanh(gates[:, 2 * H:3 * H])
            o_g = jax.nn.sigmoid(gates[:, 3 * H:])
            c = f_g * c + i_g * g_g
            h = o_g * jnp.tanh(c)
            outs.append(h)
        seq = outs
        feats += [h, c]
    feat = jnp.tanh(jnp.concatenate(feats, axis=-1))
    return feat @ params["fc_w"].T + params["fc_b"]


# ----------------------------------------------------------------------------
# Deterministic parameter init + demo
# ----------------------------------------------------------------------------
def init_params(key, vocab, word_embed, embed_size, num_layers, hidden):
    def u(k, shape, scale=0.1):
        return jax.random.uniform(k, shape, jnp.float32, -scale, scale)

    keys = jax.random.split(key, 3 + 4 * num_layers)
    params = {
        "embedding": u(keys[0], (vocab, word_embed), 1.0),
        "fc_w": u(keys[1], (embed_size, 2 * num_layers * hidden)),
        "fc_b": u(keys[2], (embed_size,)),
        "lstm": [],
    }
    kidx = 3
    for layer in range(num_layers):
        in_dim = word_embed if layer == 0 else hidden
        w_ih = u(keys[kidx + 0], (4 * hidden, in_dim))
        w_hh = u(keys[kidx + 1], (4 * hidden, hidden))
        b_ih = u(keys[kidx + 2], (4 * hidden,))
        b_hh = u(keys[kidx + 3], (4 * hidden,))
        params["lstm"].append((w_ih, w_hh, b_ih, b_hh))
        kidx += 4
    return params


if __name__ == "__main__":
    # Small shapes consistent with the module.
    qstVocab_size = 50
    word_embed_size = 32
    embed_size = 32
    num_layers = 2
    hidden_size = 32
    batch, seq_len = 4, 8

    key = jax.random.PRNGKey(0)
    k_params, k_q = jax.random.split(key)
    params = init_params(
        k_params, qstVocab_size, word_embed_size, embed_size, num_layers, hidden_size
    )
    prepped = prepare_params(
        params, num_layers=num_layers, hidden_size=hidden_size, embed_size=embed_size
    )
    question = jax.random.randint(k_q, (batch, seq_len), 0, qstVocab_size, jnp.int32)

    out = qst_encoder_pallas(
        question,
        prepped,
        num_layers=num_layers,
        hidden_size=hidden_size,
        embed_size=embed_size,
    )
    out = jax.block_until_ready(out)

    ref = qst_encoder_reference(
        question, params, num_layers=num_layers, hidden_size=hidden_size
    )
    assert out.shape == (batch, embed_size)
    # Kernel uses bf16 weights/activations (f32 accumulation & gate math); the
    # reference is pure f32, so allow mixed-precision tolerance.
    assert jnp.allclose(out, ref, rtol=2e-2, atol=2e-2), "mismatch vs reference"

    print("KERNEL_OK")
</pallas_src>

<mosaic_0001>
module attributes {stable_mosaic.version = 11 : i64} {
  func.func @qst_encoder_kernel(%arg0: i32, %arg1: memref<8x8x32xbf16, #tpu.memory_space<vmem>>, %arg2: memref<65x128xbf16, #tpu.memory_space<vmem>>, %arg3: memref<65x128xbf16, #tpu.memory_space<vmem>>, %arg4: memref<129x128xbf16, #tpu.memory_space<vmem>>, %arg5: memref<8x128xf32, #tpu.memory_space<vmem>>, %arg6: memref<8x8x128xf32, #tpu.memory_space<vmem>>, %arg7: memref<8x8x32xf32, #tpu.memory_space<vmem>>, %arg8: memref<8x128xf32, #tpu.memory_space<vmem>>) attributes {dimension_semantics = [#tpu.dimension_semantics<parallel>], iteration_bounds = array<i64: 1>, scalar_prefetch = 0 : i64, scratch_operands = 3 : i64, tpu.core_type = #tpu.core_type<tc>, window_params = [{transform_indices = @transform_0, window_bounds = array<i64: 8, 8, 32>}, {pipeline_mode = #tpu.pipeline_mode<synchronous>, transform_indices = @transform_1, window_bounds = array<i64: 65, 128>}, {pipeline_mode = #tpu.pipeline_mode<synchronous>, transform_indices = @transform_2, window_bounds = array<i64: 65, 128>}, {pipeline_mode = #tpu.pipeline_mode<synchronous>, transform_indices = @transform_3, window_bounds = array<i64: 129, 128>}, {transform_indices = @transform_4, window_bounds = array<i64: 8, 128>}]} {
    %c0 = arith.constant 0 : index
    %c0_0 = arith.constant 0 : index
    %c0_1 = arith.constant 0 : index
    %0 = vector.load %arg1[%c0, %c0_0, %c0_1] : memref<8x8x32xbf16, #tpu.memory_space<vmem>>, vector<8x8x32xbf16>
    %1 = arith.extf %0 : vector<8x8x32xbf16> to vector<8x8x32xf32>
    %2 = math.tanh %1 : vector<8x8x32xf32>
    %3 = vector.shape_cast %2 : vector<8x8x32xf32> to vector<64x32xf32>
    %4 = arith.truncf %3 : vector<64x32xf32> to vector<64x32xbf16>
    %c0_2 = arith.constant 0 : index
    %c0_3 = arith.constant 0 : index
    %5 = vector.load %arg2[%c0_2, %c0_3] : memref<65x128xbf16, #tpu.memory_space<vmem>>, vector<32x128xbf16>
    %c32 = arith.constant 32 : index
    %c0_4 = arith.constant 0 : index
    %6 = vector.load %arg2[%c32, %c0_4] : memref<65x128xbf16, #tpu.memory_space<vmem>>, vector<32x128xbf16>
    %c64 = arith.constant 64 : index
    %c0_5 = arith.constant 0 : index
    %7 = vector.load %arg2[%c64, %c0_5] : memref<65x128xbf16, #tpu.memory_space<vmem>>, vector<1x128xbf16>
    %8 = arith.extf %7 : vector<1x128xbf16> to vector<1x128xf32>
    %cst = arith.constant dense<0.000000e+00> : vector<64x128xf32>
    %9 = tpu.matmul %4, %5, %cst {dimension_numbers = #tpu.dot_dimension_numbers<[1], [0], [0], [1], [0, 0, 1, 1], [], []>} : vector<64x32xbf16>, vector<32x128xbf16>, vector<64x128xf32> -> vector<64x128xf32>
    %10 = vector.broadcast %8 : vector<1x128xf32> to vector<64x128xf32>
    %11 = arith.addf %9, %10 : vector<64x128xf32>
    %12 = vector.shape_cast %11 : vector<64x128xf32> to vector<8x8x128xf32>
    %c0_6 = arith.constant 0 : index
    %c0_7 = arith.constant 0 : index
    %c0_8 = arith.constant 0 : index
    %13 = vector.load %arg6[%c0_6, %c0_7, %c0_8] : memref<8x8x128xf32, #tpu.memory_space<vmem>>, vector<8x8x128xf32>
    tpu.vector_store %arg6[%c0_6, %c0_7, %c0_8], %12 {strides = array<i32>} : memref<8x8x128xf32, #tpu.memory_space<vmem>>, vector<8x8x128xf32>,
    %cst_9 = arith.constant 0.000000e+00 : f32
    %14 = vector.broadcast %cst_9 : f32 to vector<8x32xf32>
    %cst_10 = arith.constant 0.000000e+00 : f32
    %15 = vector.broadcast %cst_10 : f32 to vector<8x32xf32>
    %c0_i32 = arith.constant 0 : i32
    %16 = arith.index_cast %c0_i32 : i32 to index
    %c0_11 = arith.constant 0 : index
    %c0_12 = arith.constant 0 : index
    %17 = vector.load %arg6[%16, %c0_11, %c0_12] : memref<8x8x128xf32, #tpu.memory_space<vmem>>, vector<1x8x128xf32>
    %18 = vector.shape_cast %17 : vector<1x8x128xf32> to vector<8x128xf32>
    %19 = arith.truncf %14 : vector<8x32xf32> to vector<8x32xbf16>
    %cst_13 = arith.constant dense<0.000000e+00> : vector<8x128xf32>
    %20 = tpu.matmul %19, %6, %cst_13 {dimension_numbers = #tpu.dot_dimension_numbers<[1], [0], [0], [1], [0, 0, 1, 1], [], []>} : vector<8x32xbf16>, vector<32x128xbf16>, vector<8x128xf32> -> vector<8x128xf32>
    %21 = arith.addf %18, %20 : vector<8x128xf32>
    %22 = math.tanh %21 : vector<8x128xf32>
    %cst_14 = arith.constant 5.000000e-01 : f32
    %23 = vector.broadcast %cst_14 : f32 to vector<8x128xf32>
    %24 = arith.mulf %23, %22 : vector<8x128xf32>
    %cst_15 = arith.constant 5.000000e-01 : f32
    %25 = vector.broadcast %cst_15 : f32 to vector<8x128xf32>
    %26 = arith.addf %24, %25 : vector<8x128xf32>
    %27 = vector.extract_strided_slice %26 {offsets = [0, 0], sizes = [8, 32], strides = [1, 1]} : vector<8x128xf32> to vector<8x32xf32>
    %28 = vector.extract_strided_slice %26 {offsets = [0, 32], sizes = [8, 32], strides = [1, 1]} : vector<8x128xf32> to vector<8x32xf32>
    %29 = vector.extract_strided_slice %22 {offsets = [0, 64], sizes = [8, 32], strides = [1, 1]} : vector<8x128xf32> to vector<8x32xf32>
    %30 = vector.extract_strided_slice %26 {offsets = [0, 96], sizes = [8, 32], strides = [1, 1]} : vector<8x128xf32> to vector<8x32xf32>
    %31 = arith.mulf %28, %15 : vector<8x32xf32>
    %32 = arith.mulf %27, %29 : vector<8x32xf32>
    %33 = arith.addf %31, %32 : vector<8x32xf32>
    %34 = math.tanh %33 : vector<8x32xf32>
    %35 = arith.mulf %30, %34 : vector<8x32xf32>
    %36 = arith.index_cast %c0_i32 : i32 to index
    %c0_16 = arith.constant 0 : index
    %c0_17 = arith.constant 0 : index
    %37 = vector.load %arg7[%36, %c0_16, %c0_17] : memref<8x8x32xf32, #tpu.memory_space<vmem>>, vector<1x8x32xf32>
    %38 = vector.shape_cast %37 : vector<1x8x32xf32> to vector<8x32xf32>
    %39 = vector.shape_cast %35 : vector<8x32xf32> to vector<1x8x32xf32>
    tpu.vector_store %arg7[%36, %c0_16, %c0_17], %39 {strides = array<i32>} : memref<8x8x32xf32, #tpu.memory_space<vmem>>, vector<1x8x32xf32>,
    %c1_i32 = arith.constant 1 : i32
    %40 = arith.index_cast %c1_i32 : i32 to index
    %c0_18 = arith.constant 0 : index
    %c0_19 = arith.constant 0 : index
    %41 = vector.load %arg6[%40, %c0_18, %c0_19] : memref<8x8x128xf32, #tpu.memory_space<vmem>>, vector<1x8x128xf32>
    %42 = vector.shape_cast %41 : vector<1x8x128xf32> to vector<8x128xf32>
    %43 = arith.truncf %35 : vector<8x32xf32> to vector<8x32xbf16>
    %cst_20 = arith.constant dense<0.000000e+00> : vector<8x128xf32>
    %44 = tpu.matmul %43, %6, %cst_20 {dimension_numbers = #tpu.dot_dimension_numbers<[1], [0], [0], [1], [0, 0, 1, 1], [], []>} : vector<8x32xbf16>, vector<32x128xbf16>, vector<8x128xf32> -> vector<8x128xf32>
    %45 = arith.addf %42, %44 : vector<8x128xf32>
    %46 = math.tanh %45 : vector<8x128xf32>
    %cst_21 = arith.constant 5.000000e-01 : f32
    %47 = vector.broadcast %cst_21 : f32 to vector<8x128xf32>
    %48 = arith.mulf %47, %46 : vector<8x128xf32>
    %cst_22 = arith.constant 5.000000e-01 : f32
    %49 = vector.broadcast %cst_22 : f32 to vector<8x128xf32>
    %50 = arith.addf %48, %49 : vector<8x128xf32>
    %51 = vector.extract_strided_slice %50 {offsets = [0, 0], sizes = [8, 32], strides = [1, 1]} : vector<8x128xf32> to vector<8x32xf32>
    %52 = vector.extract_strided_slice %50 {offsets = [0, 32], sizes = [8, 32], strides = [1, 1]} : vector<8x128xf32> to vector<8x32xf32>
    %53 = vector.extract_strided_slice %46 {offsets = [0, 64], sizes = [8, 32], strides = [1, 1]} : vector<8x128xf32> to vector<8x32xf32>
    %54 = vector.extract_strided_slice %50 {offsets = [0, 96], sizes = [8, 32], strides = [1, 1]} : vector<8x128xf32> to vector<8x32xf32>
    %55 = arith.mulf %52, %33 : vector<8x32xf32>
    %56 = arith.mulf %51, %53 : vector<8x32xf32>
    %57 = arith.addf %55, %56 : vector<8x32xf32>
    %58 = math.tanh %57 : vector<8x32xf32>
    %59 = arith.mulf %54, %58 : vector<8x32xf32>
    %60 = arith.index_cast %c1_i32 : i32 to index
    %c0_23 = arith.constant 0 : index
    %c0_24 = arith.constant 0 : index
    %61 = vector.load %arg7[%60, %c0_23, %c0_24] : memref<8x8x32xf32, #tpu.memory_space<vmem>>, vector<1x8x32xf32>
    %62 = vector.shape_cast %61 : vector<1x8x32xf32> to vector<8x32xf32>
    %63 = vector.shape_cast %59 : vector<8x32xf32> to vector<1x8x32xf32>
    tpu.vector_store %arg7[%60, %c0_23, %c0_24], %63 {strides = array<i32>} : memref<8x8x32xf32, #tpu.memory_space<vmem>>, vector<1x8x32xf32>,
    %c2_i32 = arith.constant 2 : i32
    %64 = arith.index_cast %c2_i32 : i32 to index
    %c0_25 = arith.constant 0 : index
    %c0_26 = arith.constant 0 : index
    %65 = vector.load %arg6[%64, %c0_25, %c0_26] : memref<8x8x128xf32, #tpu.memory_space<vmem>>, vector<1x8x128xf32>
    %66 = vector.shape_cast %65 : vector<1x8x128xf32> to vector<8x128xf32>
    %67 = arith.truncf %59 : vector<8x32xf32> to vector<8x32xbf16>
    %cst_27 = arith.constant dense<0.000000e+00> : vector<8x128xf32>
    %68 = tpu.matmul %67, %6, %cst_27 {dimension_numbers = #tpu.dot_dimension_numbers<[1], [0], [0], [1], [0, 0, 1, 1], [], []>} : vector<8x32xbf16>, vector<32x128xbf16>, vector<8x128xf32> -> vector<8x128xf32>
    %69 = arith.addf %66, %68 : vector<8x128xf32>
    %70 = math.tanh %69 : vector<8x128xf32>
    %cst_28 = arith.constant 5.000000e-01 : f32
    %71 = vector.broadcast %cst_28 : f32 to vector<8x128xf32>
    %72 = arith.mulf %71, %70 : vector<8x128xf32>
    %cst_29 = arith.constant 5.000000e-01 : f32
    %73 = vector.broadcast %cst_29 : f32 to vector<8x128xf32>
    %74 = arith.addf %72, %73 : vector<8x128xf32>
    %75 = vector.extract_strided_slice %74 {offsets = [0, 0], sizes = [8, 32], strides = [1, 1]} : vector<8x128xf32> to vector<8x32xf32>
    %76 = vector.extract_strided_slice %74 {offsets = [0, 32], sizes = [8, 32], strides = [1, 1]} : vector<8x128xf32> to vector<8x32xf32>
    %77 = vector.extract_strided_slice %70 {offsets = [0, 64], sizes = [8, 32], strides = [1, 1]} : vector<8x128xf32> to vector<8x32xf32>
    %78 = vector.extract_strided_slice %74 {offsets = [0, 96], sizes = [8, 32], strides = [1, 1]} : vector<8x128xf32> to vector<8x32xf32>
    %79 = arith.mulf %76, %57 : vector<8x32xf32>
    %80 = arith.mulf %75, %77 : vector<8x32xf32>
    %81 = arith.addf %79, %80 : vector<8x32xf32>
    %82 = math.tanh %81 : vector<8x32xf32>
    %83 = arith.mulf %78, %82 : vector<8x32xf32>
    %84 = arith.index_cast %c2_i32 : i32 to index
    %c0_30 = arith.constant 0 : index
    %c0_31 = arith.constant 0 : index
    %85 = vector.load %arg7[%84, %c0_30, %c0_31] : memref<8x8x32xf32, #tpu.memory_space<vmem>>, vector<1x8x32xf32>
    %86 = vector.shape_cast %85 : vector<1x8x32xf32> to vector<8x32xf32>
    %87 = vector.shape_cast %83 : vector<8x32xf32> to vector<1x8x32xf32>
    tpu.vector_store %arg7[%84, %c0_30, %c0_31], %87 {strides = array<i32>} : memref<8x8x32xf32, #tpu.memory_space<vmem>>, vector<1x8x32xf32>,
    %c3_i32 = arith.constant 3 : i32
    %88 = arith.index_cast %c3_i32 : i32 to index
    %c0_32 = arith.constant 0 : index
    %c0_33 = arith.constant 0 : index
    %89 = vector.load %arg6[%88, %c0_32, %c0_33] : memref<8x8x128xf32, #tpu.memory_space<vmem>>, vector<1x8x128xf32>
    %90 = vector.shape_cast %89 : vector<1x8x128xf32> to vector<8x128xf32>
    %91 = arith.truncf %83 : vector<8x32xf32> to vector<8x32xbf16>
    %cst_34 = arith.constant dense<0.000000e+00> : vector<8x128xf32>
    %92 = tpu.matmul %91, %6, %cst_34 {dimension_numbers = #tpu.dot_dimension_numbers<[1], [0], [0], [1], [0, 0, 1, 1], [], []>} : vector<8x32xbf16>, vector<32x128xbf16>, vector<8x128xf32> -> vector<8x128xf32>
    %93 = arith.addf %90, %92 : vector<8x128xf32>
    %94 = math.tanh %93 : vector<8x128xf32>
    %cst_35 = arith.constant 5.000000e-01 : f32
    %95 = vector.broadcast %cst_35 : f32 to vector<8x128xf32>
    %96 = arith.mulf %95, %94 : vector<8x128xf32>
    %cst_36 = arith.constant 5.000000e-01 : f32
    %97 = vector.broadcast %cst_36 : f32 to vector<8x128xf32>
    %98 = arith.addf %96, %97 : vector<8x128xf32>
    %99 = vector.extract_strided_slice %98 {offsets = [0, 0], sizes = [8, 32], strides = [1, 1]} : vector<8x128xf32> to vector<8x32xf32>
    %100 = vector.extract_strided_slice %98 {offsets = [0, 32], sizes = [8, 32], strides = [1, 1]} : vector<8x128xf32> to vector<8x32xf32>
    %101 = vector.extract_strided_slice %94 {offsets = [0, 64], sizes = [8, 32], strides = [1, 1]} : vector<8x128xf32> to vector<8x32xf32>
    %102 = vector.extract_strided_slice %98 {offsets = [0, 96], sizes = [8, 32], strides = [1, 1]} : vector<8x128xf32> to vector<8x32xf32>
    %103 = arith.mulf %100, %81 : vector<8x32xf32>
    %104 = arith.mulf %99, %101 : vector<8x32xf32>
    %105 = arith.addf %103, %104 : vector<8x32xf32>
    %106 = math.tanh %105 : vector<8x32xf32>
    %107 = arith.mulf %102, %106 : vector<8x32xf32>
    %108 = arith.index_cast %c3_i32 : i32 to index
    %c0_37 = arith.constant 0 : index
    %c0_38 = arith.constant 0 : index
    %109 = vector.load %arg7[%108, %c0_37, %c0_38] : memref<8x8x32xf32, #tpu.memory_space<vmem>>, vector<1x8x32xf32>
    %110 = vector.shape_cast %109 : vector<1x8x32xf32> to vector<8x32xf32>
    %111 = vector.shape_cast %107 : vector<8x32xf32> to vector<1x8x32xf32>
    tpu.vector_store %arg7[%108, %c0_37, %c0_38], %111 {strides = array<i32>} : memref<8x8x32xf32, #tpu.memory_space<vmem>>, vector<1x8x32xf32>,
    %c4_i32 = arith.constant 4 : i32
    %112 = arith.index_cast %c4_i32 : i32 to index
    %c0_39 = arith.constant 0 : index
    %c0_40 = arith.constant 0 : index
    %113 = vector.load %arg6[%112, %c0_39, %c0_40] : memref<8x8x128xf32, #tpu.memory_space<vmem>>, vector<1x8x128xf32>
    %114 = vector.shape_cast %113 : vector<1x8x128xf32> to vector<8x128xf32>
    %115 = arith.truncf %107 : vector<8x32xf32> to vector<8x32xbf16>
    %cst_41 = arith.constant dense<0.000000e+00> : vector<8x128xf32>
    %116 = tpu.matmul %115, %6, %cst_41 {dimension_numbers = #tpu.dot_dimension_numbers<[1], [0], [0], [1], [0, 0, 1, 1], [], []>} : vector<8x32xbf16>, vector<32x128xbf16>, vector<8x128xf32> -> vector<8x128xf32>
    %117 = arith.addf %114, %116 : vector<8x128xf32>
    %118 = math.tanh %117 : vector<8x128xf32>
    %cst_42 = arith.constant 5.000000e-01 : f32
    %119 = vector.broadcast %cst_42 : f32 to vector<8x128xf32>
    %120 = arith.mulf %119, %118 : vector<8x128xf32>
    %cst_43 = arith.constant 5.000000e-01 : f32
    %121 = vector.broadcast %cst_43 : f32 to vector<8x128xf32>
    %122 = arith.addf %120, %121 : vector<8x128xf32>
    %123 = vector.extract_strided_slice %122 {offsets = [0, 0], sizes = [8, 32], strides = [1, 1]} : vector<8x128xf32> to vector<8x32xf32>
    %124 = vector.extract_strided_slice %122 {offsets = [0, 32], sizes = [8, 32], strides = [1, 1]} : vector<8x128xf32> to vector<8x32xf32>
    %125 = vector.extract_strided_slice %118 {offsets = [0, 64], sizes = [8, 32], strides = [1, 1]} : vector<8x128xf32> to vector<8x32xf32>
    %126 = vector.extract_strided_slice %122 {offsets = [0, 96], sizes = [8, 32], strides = [1, 1]} : vector<8x128xf32> to vector<8x32xf32>
    %127 = arith.mulf %124, %105 : vector<8x32xf32>
    %128 = arith.mulf %123, %125 : vector<8x32xf32>
    %129 = arith.addf %127, %128 : vector<8x32xf32>
    %130 = math.tanh %129 : vector<8x32xf32>
    %131 = arith.mulf %126, %130 : vector<8x32xf32>
    %132 = arith.index_cast %c4_i32 : i32 to index
    %c0_44 = arith.constant 0 : index
    %c0_45 = arith.constant 0 : index
    %133 = vector.load %arg7[%132, %c0_44, %c0_45] : memref<8x8x32xf32, #tpu.memory_space<vmem>>, vector<1x8x32xf32>
    %134 = vector.shape_cast %133 : vector<1x8x32xf32> to vector<8x32xf32>
    %135 = vector.shape_cast %131 : vector<8x32xf32> to vector<1x8x32xf32>
    tpu.vector_store %arg7[%132, %c0_44, %c0_45], %135 {strides = array<i32>} : memref<8x8x32xf32, #tpu.memory_space<vmem>>, vector<1x8x32xf32>,
    %c5_i32 = arith.constant 5 : i32
    %136 = arith.index_cast %c5_i32 : i32 to index
    %c0_46 = arith.constant 0 : index
    %c0_47 = arith.constant 0 : index
    %137 = vector.load %arg6[%136, %c0_46, %c0_47] : memref<8x8x128xf32, #tpu.memory_space<vmem>>, vector<1x8x128xf32>
    %138 = vector.shape_cast %137 : vector<1x8x128xf32> to vector<8x128xf32>
    %139 = arith.truncf %131 : vector<8x32xf32> to vector<8x32xbf16>
    %cst_48 = arith.constant dense<0.000000e+00> : vector<8x128xf32>
    %140 = tpu.matmul %139, %6, %cst_48 {dimension_numbers = #tpu.dot_dimension_numbers<[1], [0], [0], [1], [0, 0, 1, 1], [], []>} : vector<8x32xbf16>, vector<32x128xbf16>, vector<8x128xf32> -> vector<8x128xf32>
    %141 = arith.addf %138, %140 : vector<8x128xf32>
    %142 = math.tanh %141 : vector<8x128xf32>
    %cst_49 = arith.constant 5.000000e-01 : f32
    %143 = vector.broadcast %cst_49 : f32 to vector<8x128xf32>
    %144 = arith.mulf %143, %142 : vector<8x128xf32>
    %cst_50 = arith.constant 5.000000e-01 : f32
    %145 = vector.broadcast %cst_50 : f32 to vector<8x128xf32>
    %146 = arith.addf %144, %145 : vector<8x128xf32>
    %147 = vector.extract_strided_slice %146 {offsets = [0, 0], sizes = [8, 32], strides = [1, 1]} : vector<8x128xf32> to vector<8x32xf32>
    %148 = vector.extract_strided_slice %146 {offsets = [0, 32], sizes = [8, 32], strides = [1, 1]} : vector<8x128xf32> to vector<8x32xf32>
    %149 = vector.extract_strided_slice %142 {offsets = [0, 64], sizes = [8, 32], strides = [1, 1]} : vector<8x128xf32> to vector<8x32xf32>
    %150 = vector.extract_strided_slice %146 {offsets = [0, 96], sizes = [8, 32], strides = [1, 1]} : vector<8x128xf32> to vector<8x32xf32>
    %151 = arith.mulf %148, %129 : vector<8x32xf32>
    %152 = arith.mulf %147, %149 : vector<8x32xf32>
    %153 = arith.addf %151, %152 : vector<8x32xf32>
    %154 = math.tanh %153 : vector<8x32xf32>
    %155 = arith.mulf %150, %154 : vector<8x32xf32>
    %156 = arith.index_cast %c5_i32 : i32 to index
    %c0_51 = arith.constant 0 : index
    %c0_52 = arith.constant 0 : index
    %157 = vector.load %arg7[%156, %c0_51, %c0_52] : memref<8x8x32xf32, #tpu.memory_space<vmem>>, vector<1x8x32xf32>
    %158 = vector.shape_cast %157 : vector<1x8x32xf32> to vector<8x32xf32>
    %159 = vector.shape_cast %155 : vector<8x32xf32> to vector<1x8x32xf32>
    tpu.vector_store %arg7[%156, %c0_51, %c0_52], %159 {strides = array<i32>} : memref<8x8x32xf32, #tpu.memory_space<vmem>>, vector<1x8x32xf32>,
    %c6_i32 = arith.constant 6 : i32
    %160 = arith.index_cast %c6_i32 : i32 to index
    %c0_53 = arith.constant 0 : index
    %c0_54 = arith.constant 0 : index
    %161 = vector.load %arg6[%160, %c0_53, %c0_54] : memref<8x8x128xf32, #tpu.memory_space<vmem>>, vector<1x8x128xf32>
    %162 = vector.shape_cast %161 : vector<1x8x128xf32> to vector<8x128xf32>
    %163 = arith.truncf %155 : vector<8x32xf32> to vector<8x32xbf16>
    %cst_55 = arith.constant dense<0.000000e+00> : vector<8x128xf32>
    %164 = tpu.matmul %163, %6, %cst_55 {dimension_numbers = #tpu.dot_dimension_numbers<[1], [0], [0], [1], [0, 0, 1, 1], [], []>} : vector<8x32xbf16>, vector<32x128xbf16>, vector<8x128xf32> -> vector<8x128xf32>
    %165 = arith.addf %162, %164 : vector<8x128xf32>
    %166 = math.tanh %165 : vector<8x128xf32>
    %cst_56 = arith.constant 5.000000e-01 : f32
    %167 = vector.broadcast %cst_56 : f32 to vector<8x128xf32>
    %168 = arith.mulf %167, %166 : vector<8x128xf32>
    %cst_57 = arith.constant 5.000000e-01 : f32
    %169 = vector.broadcast %cst_57 : f32 to vector<8x128xf32>
    %170 = arith.addf %168, %169 : vector<8x128xf32>
    %171 = vector.extract_strided_slice %170 {offsets = [0, 0], sizes = [8, 32], strides = [1, 1]} : vector<8x128xf32> to vector<8x32xf32>
    %172 = vector.extract_strided_slice %170 {offsets = [0, 32], sizes = [8, 32], strides = [1, 1]} : vector<8x128xf32> to vector<8x32xf32>
    %173 = vector.extract_strided_slice %166 {offsets = [0, 64], sizes = [8, 32], strides = [1, 1]} : vector<8x128xf32> to vector<8x32xf32>
    %174 = vector.extract_strided_slice %170 {offsets = [0, 96], sizes = [8, 32], strides = [1, 1]} : vector<8x128xf32> to vector<8x32xf32>
    %175 = arith.mulf %172, %153 : vector<8x32xf32>
    %176 = arith.mulf %171, %173 : vector<8x32xf32>
    %177 = arith.addf %175, %176 : vector<8x32xf32>
    %178 = math.tanh %177 : vector<8x32xf32>
    %179 = arith.mulf %174, %178 : vector<8x32xf32>
    %180 = arith.index_cast %c6_i32 : i32 to index
    %c0_58 = arith.constant 0 : index
    %c0_59 = arith.constant 0 : index
    %181 = vector.load %arg7[%180, %c0_58, %c0_59] : memref<8x8x32xf32, #tpu.memory_space<vmem>>, vector<1x8x32xf32>
    %182 = vector.shape_cast %181 : vector<1x8x32xf32> to vector<8x32xf32>
    %183 = vector.shape_cast %179 : vector<8x32xf32> to vector<1x8x32xf32>
    tpu.vector_store %arg7[%180, %c0_58, %c0_59], %183 {strides = array<i32>} : memref<8x8x32xf32, #tpu.memory_space<vmem>>, vector<1x8x32xf32>,
    %c7_i32 = arith.constant 7 : i32
    %184 = arith.index_cast %c7_i32 : i32 to index
    %c0_60 = arith.constant 0 : index
    %c0_61 = arith.constant 0 : index
    %185 = vector.load %arg6[%184, %c0_60, %c0_61] : memref<8x8x128xf32, #tpu.memory_space<vmem>>, vector<1x8x128xf32>
    %186 = vector.shape_cast %185 : vector<1x8x128xf32> to vector<8x128xf32>
    %187 = arith.truncf %179 : vector<8x32xf32> to vector<8x32xbf16>
    %cst_62 = arith.constant dense<0.000000e+00> : vector<8x128xf32>
    %188 = tpu.matmul %187, %6, %cst_62 {dimension_numbers = #tpu.dot_dimension_numbers<[1], [0], [0], [1], [0, 0, 1, 1], [], []>} : vector<8x32xbf16>, vector<32x128xbf16>, vector<8x128xf32> -> vector<8x128xf32>
    %189 = arith.addf %186, %188 : vector<8x128xf32>
    %190 = math.tanh %189 : vector<8x128xf32>
    %cst_63 = arith.constant 5.000000e-01 : f32
    %191 = vector.broadcast %cst_63 : f32 to vector<8x128xf32>
    %192 = arith.mulf %191, %190 : vector<8x128xf32>
    %cst_64 = arith.constant 5.000000e-01 : f32
    %193 = vector.broadcast %cst_64 : f32 to vector<8x128xf32>
    %194 = arith.addf %192, %193 : vector<8x128xf32>
    %195 = vector.extract_strided_slice %194 {offsets = [0, 0], sizes = [8, 32], strides = [1, 1]} : vector<8x128xf32> to vector<8x32xf32>
    %196 = vector.extract_strided_slice %194 {offsets = [0, 32], sizes = [8, 32], strides = [1, 1]} : vector<8x128xf32> to vector<8x32xf32>
    %197 = vector.extract_strided_slice %190 {offsets = [0, 64], sizes = [8, 32], strides = [1, 1]} : vector<8x128xf32> to vector<8x32xf32>
    %198 = vector.extract_strided_slice %194 {offsets = [0, 96], sizes = [8, 32], strides = [1, 1]} : vector<8x128xf32> to vector<8x32xf32>
    %199 = arith.mulf %196, %177 : vector<8x32xf32>
    %200 = arith.mulf %195, %197 : vector<8x32xf32>
    %201 = arith.addf %199, %200 : vector<8x32xf32>
    %202 = math.tanh %201 : vector<8x32xf32>
    %203 = arith.mulf %198, %202 : vector<8x32xf32>
    %204 = arith.index_cast %c7_i32 : i32 to index
    %c0_65 = arith.constant 0 : index
    %c0_66 = arith.constant 0 : index
    %205 = vector.load %arg7[%204, %c0_65, %c0_66] : memref<8x8x32xf32, #tpu.memory_space<vmem>>, vector<1x8x32xf32>
    %206 = vector.shape_cast %205 : vector<1x8x32xf32> to vector<8x32xf32>
    %207 = vector.shape_cast %203 : vector<8x32xf32> to vector<1x8x32xf32>
    tpu.vector_store %arg7[%204, %c0_65, %c0_66], %207 {strides = array<i32>} : memref<8x8x32xf32, #tpu.memory_space<vmem>>, vector<1x8x32xf32>,
    %c8_i32 = arith.constant 8 : i32
    %c0_67 = arith.constant 0 : index
    %c0_68 = arith.constant 0 : index
    %208 = vector.load %arg8[%c0_67, %c0_68] : memref<8x128xf32, #tpu.memory_space<vmem>>, vector<8x32xf32>
    tpu.vector_store %arg8[%c0_67, %c0_68], %203 {strides = array<i32>} : memref<8x128xf32, #tpu.memory_space<vmem>>, vector<8x32xf32>,
    %c0_69 = arith.constant 0 : index
    %c32_70 = arith.constant 32 : index
    %209 = vector.load %arg8[%c0_69, %c32_70] : memref<8x128xf32, #tpu.memory_space<vmem>>, vector<8x32xf32>
    tpu.vector_store %arg8[%c0_69, %c32_70], %201 {strides = array<i32>} : memref<8x128xf32, #tpu.memory_space<vmem>>, vector<8x32xf32>,
    %c0_71 = arith.constant 0 : index
    %c0_72 = arith.constant 0 : index
    %210 = vector.load %arg3[%c0_71, %c0_72] : memref<65x128xbf16, #tpu.memory_space<vmem>>, vector<32x128xbf16>
    %c32_73 = arith.constant 32 : index
    %c0_74 = arith.constant 0 : index
    %211 = vector.load %arg3[%c32_73, %c0_74] : memref<65x128xbf16, #tpu.memory_space<vmem>>, vector<32x128xbf16>
    %c64_75 = arith.constant 64 : index
    %c0_76 = arith.constant 0 : index
    %212 = vector.load %arg3[%c64_75, %c0_76] : memref<65x128xbf16, #tpu.memory_space<vmem>>, vector<1x128xbf16>
    %213 = arith.extf %212 : vector<1x128xbf16> to vector<1x128xf32>
    %c0_77 = arith.constant 0 : index
    %c0_78 = arith.constant 0 : index
    %c0_79 = arith.constant 0 : index
    %214 = vector.load %arg7[%c0_77, %c0_78, %c0_79] : memref<8x8x32xf32, #tpu.memory_space<vmem>>, vector<8x8x32xf32>
    %215 = vector.shape_cast %214 : vector<8x8x32xf32> to vector<64x32xf32>
    %216 = arith.truncf %215 : vector<64x32xf32> to vector<64x32xbf16>
    %cst_80 = arith.constant dense<0.000000e+00> : vector<64x128xf32>
    %217 = tpu.matmul %216, %210, %cst_80 {dimension_numbers = #tpu.dot_dimension_numbers<[1], [0], [0], [1], [0, 0, 1, 1], [], []>} : vector<64x32xbf16>, vector<32x128xbf16>, vector<64x128xf32> -> vector<64x128xf32>
    %218 = vector.broadcast %213 : vector<1x128xf32> to vector<64x128xf32>
    %219 = arith.addf %217, %218 : vector<64x128xf32>
    %220 = vector.shape_cast %219 : vector<64x128xf32> to vector<8x8x128xf32>
    %c0_81 = arith.constant 0 : index
    %c0_82 = arith.constant 0 : index
    %c0_83 = arith.constant 0 : index
    %221 = vector.load %arg6[%c0_81, %c0_82, %c0_83] : memref<8x8x128xf32, #tpu.memory_space<vmem>>, vector<8x8x128xf32>
    tpu.vector_store %arg6[%c0_81, %c0_82, %c0_83], %220 {strides = array<i32>} : memref<8x8x128xf32, #tpu.memory_space<vmem>>, vector<8x8x128xf32>,
    %cst_84 = arith.constant 0.000000e+00 : f32
    %222 = vector.broadcast %cst_84 : f32 to vector<8x32xf32>
    %cst_85 = arith.constant 0.000000e+00 : f32
    %223 = vector.broadcast %cst_85 : f32 to vector<8x32xf32>
    %c0_i32_86 = arith.constant 0 : i32
    %224 = arith.index_cast %c0_i32_86 : i32 to index
    %c0_87 = arith.constant 0 : index
    %c0_88 = arith.constant 0 : index
    %225 = vector.load %arg6[%224, %c0_87, %c0_88] : memref<8x8x128xf32, #tpu.memory_space<vmem>>, vector<1x8x128xf32>
    %226 = vector.shape_cast %225 : vector<1x8x128xf32> to vector<8x128xf32>
    %227 = arith.truncf %222 : vector<8x32xf32> to vector<8x32xbf16>
    %cst_89 = arith.constant dense<0.000000e+00> : vector<8x128xf32>
    %228 = tpu.matmul %227, %211, %cst_89 {dimension_numbers = #tpu.dot_dimension_numbers<[1], [0], [0], [1], [0, 0, 1, 1], [], []>} : vector<8x32xbf16>, vector<32x128xbf16>, vector<8x128xf32> -> vector<8x128xf32>
    %229 = arith.addf %226, %228 : vector<8x128xf32>
    %230 = math.tanh %229 : vector<8x128xf32>
    %cst_90 = arith.constant 5.000000e-01 : f32
    %231 = vector.broadcast %cst_90 : f32 to vector<8x128xf32>
    %232 = arith.mulf %231, %230 : vector<8x128xf32>
    %cst_91 = arith.constant 5.000000e-01 : f32
    %233 = vector.broadcast %cst_91 : f32 to vector<8x128xf32>
    %234 = arith.addf %232, %233 : vector<8x128xf32>
    %235 = vector.extract_strided_slice %234 {offsets = [0, 0], sizes = [8, 32], strides = [1, 1]} : vector<8x128xf32> to vector<8x32xf32>
    %236 = vector.extract_strided_slice %234 {offsets = [0, 32], sizes = [8, 32], strides = [1, 1]} : vector<8x128xf32> to vector<8x32xf32>
    %237 = vector.extract_strided_slice %230 {offsets = [0, 64], sizes = [8, 32], strides = [1, 1]} : vector<8x128xf32> to vector<8x32xf32>
    %238 = vector.extract_strided_slice %234 {offsets = [0, 96], sizes = [8, 32], strides = [1, 1]} : vector<8x128xf32> to vector<8x32xf32>
    %239 = arith.mulf %236, %223 : vector<8x32xf32>
    %240 = arith.mulf %235, %237 : vector<8x32xf32>
    %241 = arith.addf %239, %240 : vector<8x32xf32>
    %242 = math.tanh %241 : vector<8x32xf32>
    %243 = arith.mulf %238, %242 : vector<8x32xf32>
    %c1_i32_92 = arith.constant 1 : i32
    %244 = arith.index_cast %c1_i32_92 : i32 to index
    %c0_93 = arith.constant 0 : index
    %c0_94 = arith.constant 0 : index
    %245 = vector.load %arg6[%244, %c0_93, %c0_94] : memref<8x8x128xf32, #tpu.memory_space<vmem>>, vector<1x8x128xf32>
    %246 = vector.shape_cast %245 : vector<1x8x128xf32> to vector<8x128xf32>
    %247 = arith.truncf %243 : vector<8x32xf32> to vector<8x32xbf16>
    %cst_95 = arith.constant dense<0.000000e+00> : vector<8x128xf32>
    %248 = tpu.matmul %247, %211, %cst_95 {dimension_numbers = #tpu.dot_dimension_numbers<[1], [0], [0], [1], [0, 0, 1, 1], [], []>} : vector<8x32xbf16>, vector<32x128xbf16>, vector<8x128xf32> -> vector<8x128xf32>
    %249 = arith.addf %246, %248 : vector<8x128xf32>
    %250 = math.tanh %249 : vector<8x128xf32>
    %cst_96 = arith.constant 5.000000e-01 : f32
    %251 = vector.broadcast %cst_96 : f32 to vector<8x128xf32>
    %252 = arith.mulf %251, %250 : vector<8x128xf32>
    %cst_97 = arith.constant 5.000000e-01 : f32
    %253 = vector.broadcast %cst_97 : f32 to vector<8x128xf32>
    %254 = arith.addf %252, %253 : vector<8x128xf32>
    %255 = vector.extract_strided_slice %254 {offsets = [0, 0], sizes = [8, 32], strides = [1, 1]} : vector<8x128xf32> to vector<8x32xf32>
    %256 = vector.extract_strided_slice %254 {offsets = [0, 32], sizes = [8, 32], strides = [1, 1]} : vector<8x128xf32> to vector<8x32xf32>
    %257 = vector.extract_strided_slice %250 {offsets = [0, 64], sizes = [8, 32], strides = [1, 1]} : vector<8x128xf32> to vector<8x32xf32>
    %258 = vector.extract_strided_slice %254 {offsets = [0, 96], sizes = [8, 32], strides = [1, 1]} : vector<8x128xf32> to vector<8x32xf32>
    %259 = arith.mulf %256, %241 : vector<8x32xf32>
    %260 = arith.mulf %255, %257 : vector<8x32xf32>
    %261 = arith.addf %259, %260 : vector<8x32xf32>
    %262 = math.tanh %261 : vector<8x32xf32>
    %263 = arith.mulf %258, %262 : vector<8x32xf32>
    %c2_i32_98 = arith.constant 2 : i32
    %264 = arith.index_cast %c2_i32_98 : i32 to index
    %c0_99 = arith.constant 0 : index
    %c0_100 = arith.constant 0 : index
    %265 = vector.load %arg6[%264, %c0_99, %c0_100] : memref<8x8x128xf32, #tpu.memory_space<vmem>>, vector<1x8x128xf32>
    %266 = vector.shape_cast %265 : vector<1x8x128xf32> to vector<8x128xf32>
    %267 = arith.truncf %263 : vector<8x32xf32> to vector<8x32xbf16>
    %cst_101 = arith.constant dense<0.000000e+00> : vector<8x128xf32>
    %268 = tpu.matmul %267, %211, %cst_101 {dimension_numbers = #tpu.dot_dimension_numbers<[1], [0], [0], [1], [0, 0, 1, 1], [], []>} : vector<8x32xbf16>, vector<32x128xbf16>, vector<8x128xf32> -> vector<8x128xf32>
    %269 = arith.addf %266, %268 : vector<8x128xf32>
    %270 = math.tanh %269 : vector<8x128xf32>
    %cst_102 = arith.constant 5.000000e-01 : f32
    %271 = vector.broadcast %cst_102 : f32 to vector<8x128xf32>
    %272 = arith.mulf %271, %270 : vector<8x128xf32>
    %cst_103 = arith.constant 5.000000e-01 : f32
    %273 = vector.broadcast %cst_103 : f32 to vector<8x128xf32>
    %274 = arith.addf %272, %273 : vector<8x128xf32>
    %275 = vector.extract_strided_slice %274 {offsets = [0, 0], sizes = [8, 32], strides = [1, 1]} : vector<8x128xf32> to vector<8x32xf32>
    %276 = vector.extract_strided_slice %274 {offsets = [0, 32], sizes = [8, 32], strides = [1, 1]} : vector<8x128xf32> to vector<8x32xf32>
    %277 = vector.extract_strided_slice %270 {offsets = [0, 64], sizes = [8, 32], strides = [1, 1]} : vector<8x128xf32> to vector<8x32xf32>
    %278 = vector.extract_strided_slice %274 {offsets = [0, 96], sizes = [8, 32], strides = [1, 1]} : vector<8x128xf32> to vector<8x32xf32>
    %279 = arith.mulf %276, %261 : vector<8x32xf32>
    %280 = arith.mulf %275, %277 : vector<8x32xf32>
    %281 = arith.addf %279, %280 : vector<8x32xf32>
    %282 = math.tanh %281 : vector<8x32xf32>
    %283 = arith.mulf %278, %282 : vector<8x32xf32>
    %c3_i32_104 = arith.constant 3 : i32
    %284 = arith.index_cast %c3_i32_104 : i32 to index
    %c0_105 = arith.constant 0 : index
    %c0_106 = arith.constant 0 : index
    %285 = vector.load %arg6[%284, %c0_105, %c0_106] : memref<8x8x128xf32, #tpu.memory_space<vmem>>, vector<1x8x128xf32>
    %286 = vector.shape_cast %285 : vector<1x8x128xf32> to vector<8x128xf32>
    %287 = arith.truncf %283 : vector<8x32xf32> to vector<8x32xbf16>
    %cst_107 = arith.constant dense<0.000000e+00> : vector<8x128xf32>
    %288 = tpu.matmul %287, %211, %cst_107 {dimension_numbers = #tpu.dot_dimension_numbers<[1], [0], [0], [1], [0, 0, 1, 1], [], []>} : vector<8x32xbf16>, vector<32x128xbf16>, vector<8x128xf32> -> vector<8x128xf32>
    %289 = arith.addf %286, %288 : vector<8x128xf32>
    %290 = math.tanh %289 : vector<8x128xf32>
    %cst_108 = arith.constant 5.000000e-01 : f32
    %291 = vector.broadcast %cst_108 : f32 to vector<8x128xf32>
    %292 = arith.mulf %291, %290 : vector<8x128xf32>
    %cst_109 = arith.constant 5.000000e-01 : f32
    %293 = vector.broadcast %cst_109 : f32 to vector<8x128xf32>
    %294 = arith.addf %292, %293 : vector<8x128xf32>
    %295 = vector.extract_strided_slice %294 {offsets = [0, 0], sizes = [8, 32], strides = [1, 1]} : vector<8x128xf32> to vector<8x32xf32>
    %296 = vector.extract_strided_slice %294 {offsets = [0, 32], sizes = [8, 32], strides = [1, 1]} : vector<8x128xf32> to vector<8x32xf32>
    %297 = vector.extract_strided_slice %290 {offsets = [0, 64], sizes = [8, 32], strides = [1, 1]} : vector<8x128xf32> to vector<8x32xf32>
    %298 = vector.extract_strided_slice %294 {offsets = [0, 96], sizes = [8, 32], strides = [1, 1]} : vector<8x128xf32> to vector<8x32xf32>
    %299 = arith.mulf %296, %281 : vector<8x32xf32>
    %300 = arith.mulf %295, %297 : vector<8x32xf32>
    %301 = arith.addf %299, %300 : vector<8x32xf32>
    %302 = math.tanh %301 : vector<8x32xf32>
    %303 = arith.mulf %298, %302 : vector<8x32xf32>
    %c4_i32_110 = arith.constant 4 : i32
    %304 = arith.index_cast %c4_i32_110 : i32 to index
    %c0_111 = arith.constant 0 : index
    %c0_112 = arith.constant 0 : index
    %305 = vector.load %arg6[%304, %c0_111, %c0_112] : memref<8x8x128xf32, #tpu.memory_space<vmem>>, vector<1x8x128xf32>
    %306 = vector.shape_cast %305 : vector<1x8x128xf32> to vector<8x128xf32>
    %307 = arith.truncf %303 : vector<8x32xf32> to vector<8x32xbf16>
    %cst_113 = arith.constant dense<0.000000e+00> : vector<8x128xf32>
    %308 = tpu.matmul %307, %211, %cst_113 {dimension_numbers = #tpu.dot_dimension_numbers<[1], [0], [0], [1], [0, 0, 1, 1], [], []>} : vector<8x32xbf16>, vector<32x128xbf16>, vector<8x128xf32> -> vector<8x128xf32>
    %309 = arith.addf %306, %308 : vector<8x128xf32>
    %310 = math.tanh %309 : vector<8x128xf32>
    %cst_114 = arith.constant 5.000000e-01 : f32
    %311 = vector.broadcast %cst_114 : f32 to vector<8x128xf32>
    %312 = arith.mulf %311, %310 : vector<8x128xf32>
    %cst_115 = arith.constant 5.000000e-01 : f32
    %313 = vector.broadcast %cst_115 : f32 to vector<8x128xf32>
    %314 = arith.addf %312, %313 : vector<8x128xf32>
    %315 = vector.extract_strided_slice %314 {offsets = [0, 0], sizes = [8, 32], strides = [1, 1]} : vector<8x128xf32> to vector<8x32xf32>
    %316 = vector.extract_strided_slice %314 {offsets = [0, 32], sizes = [8, 32], strides = [1, 1]} : vector<8x128xf32> to vector<8x32xf32>
    %317 = vector.extract_strided_slice %310 {offsets = [0, 64], sizes = [8, 32], strides = [1, 1]} : vector<8x128xf32> to vector<8x32xf32>
    %318 = vector.extract_strided_slice %314 {offsets = [0, 96], sizes = [8, 32], strides = [1, 1]} : vector<8x128xf32> to vector<8x32xf32>
    %319 = arith.mulf %316, %301 : vector<8x32xf32>
    %320 = arith.mulf %315, %317 : vector<8x32xf32>
    %321 = arith.addf %319, %320 : vector<8x32xf32>
    %322 = math.tanh %321 : vector<8x32xf32>
    %323 = arith.mulf %318, %322 : vector<8x32xf32>
    %c5_i32_116 = arith.constant 5 : i32
    %324 = arith.index_cast %c5_i32_116 : i32 to index
    %c0_117 = arith.constant 0 : index
    %c0_118 = arith.constant 0 : index
    %325 = vector.load %arg6[%324, %c0_117, %c0_118] : memref<8x8x128xf32, #tpu.memory_space<vmem>>, vector<1x8x128xf32>
    %326 = vector.shape_cast %325 : vector<1x8x128xf32> to vector<8x128xf32>
    %327 = arith.truncf %323 : vector<8x32xf32> to vector<8x32xbf16>
    %cst_119 = arith.constant dense<0.000000e+00> : vector<8x128xf32>
    %328 = tpu.matmul %327, %211, %cst_119 {dimension_numbers = #tpu.dot_dimension_numbers<[1], [0], [0], [1], [0, 0, 1, 1], [], []>} : vector<8x32xbf16>, vector<32x128xbf16>, vector<8x128xf32> -> vector<8x128xf32>
    %329 = arith.addf %326, %328 : vector<8x128xf32>
    %330 = math.tanh %329 : vector<8x128xf32>
    %cst_120 = arith.constant 5.000000e-01 : f32
    %331 = vector.broadcast %cst_120 : f32 to vector<8x128xf32>
    %332 = arith.mulf %331, %330 : vector<8x128xf32>
    %cst_121 = arith.constant 5.000000e-01 : f32
    %333 = vector.broadcast %cst_121 : f32 to vector<8x128xf32>
    %334 = arith.addf %332, %333 : vector<8x128xf32>
    %335 = vector.extract_strided_slice %334 {offsets = [0, 0], sizes = [8, 32], strides = [1, 1]} : vector<8x128xf32> to vector<8x32xf32>
    %336 = vector.extract_strided_slice %334 {offsets = [0, 32], sizes = [8, 32], strides = [1, 1]} : vector<8x128xf32> to vector<8x32xf32>
    %337 = vector.extract_strided_slice %330 {offsets = [0, 64], sizes = [8, 32], strides = [1, 1]} : vector<8x128xf32> to vector<8x32xf32>
    %338 = vector.extract_strided_slice %334 {offsets = [0, 96], sizes = [8, 32], strides = [1, 1]} : vector<8x128xf32> to vector<8x32xf32>
    %339 = arith.mulf %336, %321 : vector<8x32xf32>
    %340 = arith.mulf %335, %337 : vector<8x32xf32>
    %341 = arith.addf %339, %340 : vector<8x32xf32>
    %342 = math.tanh %341 : vector<8x32xf32>
    %343 = arith.mulf %338, %342 : vector<8x32xf32>
    %c6_i32_122 = arith.constant 6 : i32
    %344 = arith.index_cast %c6_i32_122 : i32 to index
    %c0_123 = arith.constant 0 : index
    %c0_124 = arith.constant 0 : index
    %345 = vector.load %arg6[%344, %c0_123, %c0_124] : memref<8x8x128xf32, #tpu.memory_space<vmem>>, vector<1x8x128xf32>
    %346 = vector.shape_cast %345 : vector<1x8x128xf32> to vector<8x128xf32>
    %347 = arith.truncf %343 : vector<8x32xf32> to vector<8x32xbf16>
    %cst_125 = arith.constant dense<0.000000e+00> : vector<8x128xf32>
    %348 = tpu.matmul %347, %211, %cst_125 {dimension_numbers = #tpu.dot_dimension_numbers<[1], [0], [0], [1], [0, 0, 1, 1], [], []>} : vector<8x32xbf16>, vector<32x128xbf16>, vector<8x128xf32> -> vector<8x128xf32>
    %349 = arith.addf %346, %348 : vector<8x128xf32>
    %350 = math.tanh %349 : vector<8x128xf32>
    %cst_126 = arith.constant 5.000000e-01 : f32
    %351 = vector.broadcast %cst_126 : f32 to vector<8x128xf32>
    %352 = arith.mulf %351, %350 : vector<8x128xf32>
    %cst_127 = arith.constant 5.000000e-01 : f32
    %353 = vector.broadcast %cst_127 : f32 to vector<8x128xf32>
    %354 = arith.addf %352, %353 : vector<8x128xf32>
    %355 = vector.extract_strided_slice %354 {offsets = [0, 0], sizes = [8, 32], strides = [1, 1]} : vector<8x128xf32> to vector<8x32xf32>
    %356 = vector.extract_strided_slice %354 {offsets = [0, 32], sizes = [8, 32], strides = [1, 1]} : vector<8x128xf32> to vector<8x32xf32>
    %357 = vector.extract_strided_slice %350 {offsets = [0, 64], sizes = [8, 32], strides = [1, 1]} : vector<8x128xf32> to vector<8x32xf32>
    %358 = vector.extract_strided_slice %354 {offsets = [0, 96], sizes = [8, 32], strides = [1, 1]} : vector<8x128xf32> to vector<8x32xf32>
    %359 = arith.mulf %356, %341 : vector<8x32xf32>
    %360 = arith.mulf %355, %357 : vector<8x32xf32>
    %361 = arith.addf %359, %360 : vector<8x32xf32>
    %362 = math.tanh %361 : vector<8x32xf32>
    %363 = arith.mulf %358, %362 : vector<8x32xf32>
    %c7_i32_128 = arith.constant 7 : i32
    %364 = arith.index_cast %c7_i32_128 : i32 to index
    %c0_129 = arith.constant 0 : index
    %c0_130 = arith.constant 0 : index
    %365 = vector.load %arg6[%364, %c0_129, %c0_130] : memref<8x8x128xf32, #tpu.memory_space<vmem>>, vector<1x8x128xf32>
    %366 = vector.shape_cast %365 : vector<1x8x128xf32> to vector<8x128xf32>
    %367 = arith.truncf %363 : vector<8x32xf32> to vector<8x32xbf16>
    %cst_131 = arith.constant dense<0.000000e+00> : vector<8x128xf32>
    %368 = tpu.matmul %367, %211, %cst_131 {dimension_numbers = #tpu.dot_dimension_numbers<[1], [0], [0], [1], [0, 0, 1, 1], [], []>} : vector<8x32xbf16>, vector<32x128xbf16>, vector<8x128xf32> -> vector<8x128xf32>
    %369 = arith.addf %366, %368 : vector<8x128xf32>
    %370 = math.tanh %369 : vector<8x128xf32>
    %cst_132 = arith.constant 5.000000e-01 : f32
    %371 = vector.broadcast %cst_132 : f32 to vector<8x128xf32>
    %372 = arith.mulf %371, %370 : vector<8x128xf32>
    %cst_133 = arith.constant 5.000000e-01 : f32
    %373 = vector.broadcast %cst_133 : f32 to vector<8x128xf32>
    %374 = arith.addf %372, %373 : vector<8x128xf32>
    %375 = vector.extract_strided_slice %374 {offsets = [0, 0], sizes = [8, 32], strides = [1, 1]} : vector<8x128xf32> to vector<8x32xf32>
    %376 = vector.extract_strided_slice %374 {offsets = [0, 32], sizes = [8, 32], strides = [1, 1]} : vector<8x128xf32> to vector<8x32xf32>
    %377 = vector.extract_strided_slice %370 {offsets = [0, 64], sizes = [8, 32], strides = [1, 1]} : vector<8x128xf32> to vector<8x32xf32>
    %378 = vector.extract_strided_slice %374 {offsets = [0, 96], sizes = [8, 32], strides = [1, 1]} : vector<8x128xf32> to vector<8x32xf32>
    %379 = arith.mulf %376, %361 : vector<8x32xf32>
    %380 = arith.mulf %375, %377 : vector<8x32xf32>
    %381 = arith.addf %379, %380 : vector<8x32xf32>
    %382 = math.tanh %381 : vector<8x32xf32>
    %383 = arith.mulf %378, %382 : vector<8x32xf32>
    %c8_i32_134 = arith.constant 8 : i32
    %c0_135 = arith.constant 0 : index
    %c64_136 = arith.constant 64 : index
    %384 = vector.load %arg8[%c0_135, %c64_136] : memref<8x128xf32, #tpu.memory_space<vmem>>, vector<8x32xf32>
    tpu.vector_store %arg8[%c0_135, %c64_136], %383 {strides = array<i32>} : memref<8x128xf32, #tpu.memory_space<vmem>>, vector<8x32xf32>,
    %c0_137 = arith.constant 0 : index
    %c96 = arith.constant 96 : index
    %385 = vector.load %arg8[%c0_137, %c96] : memref<8x128xf32, #tpu.memory_space<vmem>>, vector<8x32xf32>
    tpu.vector_store %arg8[%c0_137, %c96], %381 {strides = array<i32>} : memref<8x128xf32, #tpu.memory_space<vmem>>, vector<8x32xf32>,
    %c0_138 = arith.constant 0 : index
    %c0_139 = arith.constant 0 : index
    %386 = vector.load %arg8[%c0_138, %c0_139] : memref<8x128xf32, #tpu.memory_space<vmem>>, vector<8x128xf32>
    %387 = math.tanh %386 : vector<8x128xf32>
    %c0_140 = arith.constant 0 : index
    %c0_141 = arith.constant 0 : index
    %388 = vector.load %arg4[%c0_140, %c0_141] : memref<129x128xbf16, #tpu.memory_space<vmem>>, vector<128x128xbf16>
    %c128 = arith.constant 128 : index
    %c0_142 = arith.constant 0 : index
    %389 = vector.load %arg4[%c128, %c0_142] : memref<129x128xbf16, #tpu.memory_space<vmem>>, vector<1x128xbf16>
    %390 = arith.extf %389 : vector<1x128xbf16> to vector<1x128xf32>
    %391 = arith.truncf %387 : vector<8x128xf32> to vector<8x128xbf16>
    %cst_143 = arith.constant dense<0.000000e+00> : vector<8x128xf32>
    %392 = tpu.matmul %391, %388, %cst_143 {dimension_numbers = #tpu.dot_dimension_numbers<[1], [0], [0], [1], [0, 0, 1, 1], [], []>} : vector<8x128xbf16>, vector<128x128xbf16>, vector<8x128xf32> -> vector<8x128xf32>
    %393 = vector.broadcast %390 : vector<1x128xf32> to vector<8x128xf32>
    %394 = arith.addf %392, %393 : vector<8x128xf32>
    %c0_144 = arith.constant 0 : index
    %c0_145 = arith.constant 0 : index
    %395 = vector.load %arg5[%c0_144, %c0_145] : memref<8x128xf32, #tpu.memory_space<vmem>>, vector<8x128xf32>
    tpu.vector_store %arg5[%c0_144, %c0_145], %394 {strides = array<i32>} : memref<8x128xf32, #tpu.memory_space<vmem>>, vector<8x128xf32>,
    return
  }
  func.func @transform_0(%arg0: i32) -> (i32, i32, i32) {
    %c0_i32 = arith.constant 0 : i32
    %c0_i32_0 = arith.constant 0 : i32
    %c0_i32_1 = arith.constant 0 : i32
    return %c0_i32, %arg0, %c0_i32_0 : i32, i32, i32
  }
  func.func @transform_1(%arg0: i32) -> (i32, i32) {
    %c0_i32 = arith.constant 0 : i32
    %c0_i32_0 = arith.constant 0 : i32
    %c0_i32_1 = arith.constant 0 : i32
    return %c0_i32, %c0_i32_0 : i32, i32
  }
  func.func @transform_2(%arg0: i32) -> (i32, i32) {
    %c0_i32 = arith.constant 0 : i32
    %c0_i32_0 = arith.constant 0 : i32
    %c0_i32_1 = arith.constant 0 : i32
    return %c0_i32, %c0_i32_0 : i32, i32
  }
  func.func @transform_3(%arg0: i32) -> (i32, i32) {
    %c0_i32 = arith.constant 0 : i32
    %c0_i32_0 = arith.constant 0 : i32
    %c0_i32_1 = arith.constant 0 : i32
    return %c0_i32, %c0_i32_0 : i32, i32
  }
  func.func @transform_4(%arg0: i32) -> (i32, i32) {
    %c0_i32 = arith.constant 0 : i32
    %c0_i32_0 = arith.constant 0 : i32
    return %arg0, %c0_i32 : i32, i32
  }
}

</mosaic_0001>

<llo_original>
// kernel: tpu_custom_call.1
$region0: #{tpu_custom_call.1}
  #allocation0 [shape = 'u32[]', space=smem, size = 0x4, offset = 0x4, fixed_abs, tag = 'smem constant byte address 0x4 - core index']
  #allocation1 [shape = 'u32[144,128]{1,0:T(1,128)}', space=vmem, size = 0x12000, scoped, tag = 'internal scratch']
  #allocation2 [shape = 'f32[8,8,128]{2,1,0:T(8,128)}', space=vmem, size = 0x8000, scoped, tag = 'scratch operand']
  #allocation3 [shape = 'f32[8,8,32]{2,1,0:T(8,128)}', space=vmem, size = 0x8000, scoped, tag = 'scratch operand']
  #allocation4 [shape = 'f32[8,128]{1,0:T(8,128)}', space=vmem, size = 0x1000, scoped, tag = 'scratch operand']
  %s0 = inlined_call_operand.hbm [shape: bf16[8,8,32], index: 0, kind: input, shape index: {}]
  %s1 = inlined_call_operand.hbm [shape: bf16[65,128], index: 1, kind: input, shape index: {}]
  %s2 = inlined_call_operand.hbm [shape: bf16[65,128], index: 2, kind: input, shape index: {}]
  %s3 = inlined_call_operand.hbm [shape: bf16[129,128], index: 3, kind: input, shape index: {}]
  %s4 = inlined_call_operand.hbm [shape: f32[8,128], index: 4, kind: output, shape index: {}]
  %s5 = sld [smem:[#allocation0]]
  $region42: #{tpu_custom_call.1} parent=0
    _
  %s7 = ssub.s32 1, %s5
  %s8 = scalar_select 0, %s7, %s5
  $region1: #{tpu_custom_call.1} parent=0
    #allocation5 [shape = 'u8[16384]{0}', space=vmem, size = 0x4000, scoped, tag = 'input window, operand 0, single buffered']
    #allocation6 [shape = 's32[1]{0}', space=sflag, size = 0x4, scoped, tag = 'scoped memory for tpu_custom_call.1']
    #allocation7 [shape = 's32[1]{0}', space=sflag, size = 0x4, scoped, tag = 'scoped memory for tpu_custom_call.1']
    #allocation8 [shape = 'u8[18432]{0}', space=vmem, size = 0x4800, scoped, tag = 'input window, operand 1, single buffered']
    #allocation9 [shape = 's32[1]{0}', space=sflag, size = 0x4, scoped, tag = 'scoped memory for tpu_custom_call.1']
    #allocation10 [shape = 'u8[18432]{0}', space=vmem, size = 0x4800, scoped, tag = 'input window, operand 2, single buffered']
    #allocation11 [shape = 'u8[34816]{0}', space=vmem, size = 0x8800, scoped, tag = 'input window, operand 3, single buffered']
    #allocation12 [shape = 's32[1]{0}', space=sflag, size = 0x4, scoped, tag = 'scoped memory for tpu_custom_call.1']
    #allocation13 [shape = 'u8[4096]{0}', space=vmem, size = 0x1000, scoped, tag = 'output window, operand 0, single buffered']
    %9 = vsyncpa [#allocation6], 0
    %10 = vsyncpa [#allocation9], 0
    %11 = vsyncpa [#allocation12], 0
    %12 = vsyncpa [#allocation7], 0
    // Predicated region
    $region2: #{tpu_custom_call.1} parent=1 // pred_check
      _
    $region3: #{tpu_custom_call.1} parent=1 // pred_check_branch
      %14 = sbr.rel (0) target = $region5
    $region4: #{tpu_custom_call.1} parent=1 // pred_region
      %s16 = ssub.s32 512, 512
      %17 = vsyncadd [#allocation6], %s16
      %s18 = sshll.u32 [#allocation5], 4
      %s19 = int_to_ptr.vmem [resolvable:$true] %s18
      %24 = dma.hbm_to_vmem [thread:$0]  %s0, 512, %s19, [#allocation6], 64, 64, 4
    $region5: #{tpu_custom_call.1} parent=1 // pred_fallthru
      _
    // Predicated region
    $region6: #{tpu_custom_call.1} parent=1 // pred_check
      _
    $region7: #{tpu_custom_call.1} parent=1 // pred_check_branch
      %26 = sbr.rel (0) target = $region9
    $region8: #{tpu_custom_call.1} parent=1 // pred_region
      %s28 = ssub.s32 576, 576
      %29 = vsyncadd [#allocation9], %s28
      %s30 = sshll.u32 [#allocation8], 4
      %s31 = int_to_ptr.vmem [resolvable:$true] %s30
      %36 = dma.hbm_to_vmem [thread:$0]  %s1, 576, %s31, [#allocation9], 64, 64, 4
    $region9: #{tpu_custom_call.1} parent=1 // pred_fallthru
      _
    // Predicated region
    $region10: #{tpu_custom_call.1} parent=1 // pred_check
      _
    $region11: #{tpu_custom_call.1} parent=1 // pred_check_branch
      %38 = sbr.rel (0) target = $region13
    $region12: #{tpu_custom_call.1} parent=1 // pred_region
      %s40 = ssub.s32 576, 576
      %41 = vsyncadd [#allocation9], %s40
      %s42 = sshll.u32 [#allocation10], 4
      %s43 = int_to_ptr.vmem [resolvable:$true] %s42
      %48 = dma.hbm_to_vmem [thread:$0]  %s2, 576, %s43, [#allocation9], 64, 64, 4
    $region13: #{tpu_custom_call.1} parent=1 // pred_fallthru
      _
    // Predicated region
    $region14: #{tpu_custom_call.1} parent=1 // pred_check
      _
    $region15: #{tpu_custom_call.1} parent=1 // pred_check_branch
      %50 = sbr.rel (0) target = $region17
    $region16: #{tpu_custom_call.1} parent=1 // pred_region
      %s52 = ssub.s32 1088, 1088
      %53 = vsyncadd [#allocation12], %s52
      %s54 = sshll.u32 [#allocation11], 4
      %s55 = int_to_ptr.vmem [resolvable:$true] %s54
      %60 = dma.hbm_to_vmem [thread:$0]  %s3, 1088, %s55, [#allocation12], 64, 64, 4
    $region17: #{tpu_custom_call.1} parent=1 // pred_fallthru
      _
    // Predicated region
    $region18: #{tpu_custom_call.1} parent=1 // pred_check
      _
    $region19: #{tpu_custom_call.1} parent=1 // pred_check_branch
      %62 = sbr.rel (0) target = $region21
    $region20: #{tpu_custom_call.1} parent=1 // pred_region
      %63 = dma.done [#allocation6], 512
    $region21: #{tpu_custom_call.1} parent=1 // pred_fallthru
      _
    // Predicated region
    $region22: #{tpu_custom_call.1} parent=1 // pred_check
      _
    $region23: #{tpu_custom_call.1} parent=1 // pred_check_branch
      %65 = sbr.rel (0) target = $region25
    $region24: #{tpu_custom_call.1} parent=1 // pred_region
      %66 = dma.done [#allocation9], 576
    $region25: #{tpu_custom_call.1} parent=1 // pred_fallthru
      _
    // Predicated region
    $region26: #{tpu_custom_call.1} parent=1 // pred_check
      _
    $region27: #{tpu_custom_call.1} parent=1 // pred_check_branch
      %68 = sbr.rel (0) target = $region29
    $region28: #{tpu_custom_call.1} parent=1 // pred_region
      %69 = dma.done [#allocation9], 576
    $region29: #{tpu_custom_call.1} parent=1 // pred_fallthru
      _
    // Predicated region
    $region30: #{tpu_custom_call.1} parent=1 // pred_check
      _
    $region31: #{tpu_custom_call.1} parent=1 // pred_check_branch
      %71 = sbr.rel (0) target = $region33
    $region32: #{tpu_custom_call.1} parent=1 // pred_region
      %72 = dma.done [#allocation12], 1088
    $region33: #{tpu_custom_call.1} parent=1 // pred_fallthru
      _
    %v74 = vld [vmem:[#allocation5] sm:$0xf]
    %v75 = vld [vmem:[#allocation5 + $0x4] sm:$0xf]
    %v76 = vld [vmem:[#allocation5 + $0x8] sm:$0xf]
    %v77 = vld [vmem:[#allocation5 + $0xc] sm:$0xf]
    %v78 = vld [vmem:[#allocation5 + $0x10] sm:$0xf]
    %v79 = vld [vmem:[#allocation5 + $0x14] sm:$0xf]
    %v80 = vld [vmem:[#allocation5 + $0x18] sm:$0xf]
    %v81 = vld [vmem:[#allocation5 + $0x1c] sm:$0xf]
    %v82 = vunpack.c.l.bf16 %v74
    %v83 = vunpack.c.l.bf16 %v75
    %v84 = vunpack.c.l.bf16 %v76
    %v85 = vunpack.c.l.bf16 %v77
    %v86 = vunpack.c.l.bf16 %v78
    %v87 = vunpack.c.l.bf16 %v79
    %v88 = vunpack.c.l.bf16 %v80
    %v89 = vunpack.c.l.bf16 %v81
    %v90 = vtanh.pop %v82
    %v91 = vtanh.pop %v83
    %v92 = vtanh.pop %v84
    %v93 = vtanh.pop %v85
    %v94 = vtanh.pop %v86
    %v95 = vtanh.pop %v87
    %v96 = vtanh.pop %v88
    %v97 = vtanh.pop %v89
    %v98 = vpack.c.bf16 %v91, %v90
    %v99 = vpack.c.bf16 %v93, %v92
    %v100 = vpack.c.bf16 %v95, %v94
    %v101 = vpack.c.bf16 %v97, %v96
    %v102 = vld [vmem:[#allocation8] sm:$0xf]
    %v103 = vld [vmem:[#allocation8 + $0x4] sm:$0xf]
    %v104 = vld [vmem:[#allocation8 + $0x8] sm:$0xf]
    %v105 = vld [vmem:[#allocation8 + $0xc] sm:$0xf]
    %v106 = vld [vmem:[#allocation8 + $0x10] sm:$0xf]
    %v107 = vld [vmem:[#allocation8 + $0x14] sm:$0xf]
    %v108 = vld [vmem:[#allocation8 + $0x18] sm:$0xf]
    %v109 = vld [vmem:[#allocation8 + $0x1c] sm:$0xf]
    %v110 = vld [vmem:[#allocation8 + $0x20] sm:$0x1]
    %v111 = vunpack.c.l.bf16 %v110
    %v112 = vlaneseq
    %v113 = vshrl.u32 %v112, 7
    %v114 = vsub.s32 0, %v113
    %v115 = vrot.slane %v111, %v114
    %v120 = vunpack.c.l.b16 %v102
    %v121 = vunpack.c.l.b16 %v103
    %v122 = vunpack.c.l.b16 %v104
    %v123 = vunpack.c.l.b16 %v105
    %v124 = vpack.c.b16 %v121, %v120
    %v125 = vpack.c.b16 %v123, %v122
    %vm128 = vcmask 261120
    %v130 = vsel %vm128, %v98, 0
    %v133 = vsel %vm128, %v99, 0
    %v136 = vsel %vm128, %v100, 0
    %v139 = vsel %vm128, %v101, 0
    %141 = vmatprep.subr.bf16.mxu0 0
    %142 = vmatpush1.bf16.msra.mxu0 0
    %143 = vmatprep.subr.bf16.mxu0 0
    %144 = vmatpush1.bf16.msra.mxu0 0
    %145 = vmatprep.subr.bf16.mxu0 0
    %146 = vmatpush1.bf16.msra.mxu0 0
    %147 = vmatprep.subr.bf16.mxu0 0
    %148 = vmatpush1.bf16.msra.mxu0 0
    %149 = vmatprep.subr.bf16.mxu0 0
    %150 = vmatpush1.bf16.msra.mxu0 0
    %151 = vmatprep.subr.bf16.mxu0 0
    %152 = vmatpush1.bf16.msra.mxu0 0
    %153 = vmatprep.subr.bf16.mxu0 0
    %154 = vmatpush1.bf16.msra.mxu0 %v125
    %155 = vmatprep.subr.bf16.mxu0 0
    %156 = vmatpush1.bf16.msra.mxu0 %v124
    %157 = vmatprep.subr.bf16.mxu0 0
    %158 = vmatpush2.bf16.msra.mxu0 0
    %159 = vmatprep.subr.bf16.mxu0 0
    %160 = vmatpush2.bf16.msra.mxu0 0
    %161 = vmatprep.subr.bf16.mxu0 0
    %162 = vmatpush2.bf16.msra.mxu0 0
    %163 = vmatprep.subr.bf16.mxu0 0
    %164 = vmatpush2.bf16.msra.mxu0 0
    %165 = vmatprep.subr.bf16.mxu0 0
    %166 = vmatpush2.bf16.msra.mxu0 0
    %167 = vmatprep.subr.bf16.mxu0 0
    %168 = vmatpush2.bf16.msra.mxu0 0
    %169 = vmatprep.subr.bf16.mxu0 0
    %170 = vmatpush2.bf16.msra.mxu0 0
    %171 = vmatprep.subr.bf16.mxu0 0
    %172 = vmatpush2.bf16.msra.mxu0 0
    %173 = vmatprep.mubr.bf16.mxu0 0
    %174 = vmatmul.mubr.bf16.gmra.mxu0 %v130
    %v175 = vpop.f32.mrf.mxu0
    %v176 = vadd.f32 %v115, %v175
    %v177 = vpop.f32.mrf.mxu0
    %v178 = vpop.f32.mrf.mxu0
    %v179 = vadd.f32 %v115, %v178
    %v180 = vpop.f32.mrf.mxu0
    %181 = vmatprep.mubr.bf16.mxu0 0
    %182 = vmatmul.mubr.bf16.gmra.mxu0 %v133
    %v183 = vpop.f32.mrf.mxu0
    %v184 = vadd.f32 %v115, %v183
    %v185 = vpop.f32.mrf.mxu0
    %v186 = vpop.f32.mrf.mxu0
    %v187 = vadd.f32 %v115, %v186
    %v188 = vpop.f32.mrf.mxu0
    %189 = vmatprep.mubr.bf16.mxu0 0
    %190 = vmatmul.mubr.bf16.gmra.mxu0 %v136
    %v191 = vpop.f32.mrf.mxu0
    %v192 = vadd.f32 %v115, %v191
    %v193 = vpop.f32.mrf.mxu0
    %v194 = vpop.f32.mrf.mxu0
    %v195 = vadd.f32 %v115, %v194
    %v196 = vpop.f32.mrf.mxu0
    %197 = vmatprep.mubr.bf16.mxu0 0
    %198 = vmatmul.mubr.bf16.gmra.mxu0 %v139
    %v199 = vpop.f32.mrf.mxu0
    %v200 = vadd.f32 %v115, %v199
    %v201 = vpop.f32.mrf.mxu0
    %v202 = vpop.f32.mrf.mxu0
    %v203 = vadd.f32 %v115, %v202
    %v204 = vpop.f32.mrf.mxu0
    %205 = vdwg.mxu0
    %206 = vst [vmem:[#allocation2] sm:$0xff] %v176
    %207 = vst [vmem:[#allocation2 + $0x8] sm:$0xff] %v179
    %208 = vst [vmem:[#allocation2 + $0x10] sm:$0xff] %v184
    %209 = vst [vmem:[#allocation2 + $0x18] sm:$0xff] %v187
    %210 = vst [vmem:[#allocation2 + $0x20] sm:$0xff] %v192
    %211 = vst [vmem:[#allocation2 + $0x28] sm:$0xff] %v195
    %212 = vst [vmem:[#allocation2 + $0x30] sm:$0xff] %v200
    %213 = vst [vmem:[#allocation2 + $0x38] sm:$0xff] %v203
    %v214 = vld [vmem:[#allocation2] sm:$0xff]
    %v219 = vunpack.c.l.b16 %v106
    %v220 = vunpack.c.l.b16 %v107
    %v221 = vunpack.c.l.b16 %v108
    %v222 = vunpack.c.l.b16 %v109
    %v223 = vpack.c.b16 %v220, %v219
    %v224 = vpack.c.b16 %v222, %v221
    %v228 = vsel %vm128, 0, 0
    %230 = vmatprep.subr.bf16.mxu0 0
    %231 = vmatpush1.bf16.msra.mxu0 0
    %232 = vmatprep.subr.bf16.mxu0 0
    %233 = vmatpush1.bf16.msra.mxu0 0
    %234 = vmatprep.subr.bf16.mxu0 0
    %235 = vmatpush1.bf16.msra.mxu0 0
    %236 = vmatprep.subr.bf16.mxu0 0
    %237 = vmatpush1.bf16.msra.mxu0 0
    %238 = vmatprep.subr.bf16.mxu0 0
    %239 = vmatpush1.bf16.msra.mxu0 0
    %240 = vmatprep.subr.bf16.mxu0 0
    %241 = vmatpush1.bf16.msra.mxu0 0
    %242 = vmatprep.subr.bf16.mxu0 0
    %243 = vmatpush1.bf16.msra.mxu0 %v224
    %244 = vmatprep.subr.bf16.mxu0 0
    %245 = vmatpush1.bf16.msra.mxu0 %v223
    %246 = vmatprep.subr.bf16.mxu0 0
    %247 = vmatpush2.bf16.msra.mxu0 0
    %248 = vmatprep.subr.bf16.mxu0 0
    %249 = vmatpush2.bf16.msra.mxu0 0
    %250 = vmatprep.subr.bf16.mxu0 0
    %251 = vmatpush2.bf16.msra.mxu0 0
    %252 = vmatprep.subr.bf16.mxu0 0
    %253 = vmatpush2.bf16.msra.mxu0 0
    %254 = vmatprep.subr.bf16.mxu0 0
    %255 = vmatpush2.bf16.msra.mxu0 0
    %256 = vmatprep.subr.bf16.mxu0 0
    %257 = vmatpush2.bf16.msra.mxu0 0
    %258 = vmatprep.subr.bf16.mxu0 0
    %259 = vmatpush2.bf16.msra.mxu0 0
    %260 = vmatprep.subr.bf16.mxu0 0
    %261 = vmatpush2.bf16.msra.mxu0 0
    %262 = vmatprep.mubr.bf16.mxu0 0
    %263 = vmatmul.mubr.bf16.gmra.mxu0 %v228
    %v264 = vpop.f32.mrf.mxu0
    %v265 = vadd.f32 0.0, %v264
    %v266 = vpop.f32.mrf.mxu0
    %v267 = vpop.f32.mrf.mxu0
    %v268 = vpop.f32.mrf.mxu0
    %269 = vdwg.mxu0
    %v270 = vadd.f32 %v214, %v265
    %v271 = vtanh.pop %v270
    %v272 = vmul.f32 %v271, 0.5
    %v273 = vadd.f32 %v272, 0.5
    %v274 = vmul.f32 %v273, 0.0
    %276 = vrot.lane.b32.xlu0 %v271, 64
    %v277 = vpop.permute.xlu0 %276
    %v279 = vmul.f32 %v273, %v277
    %281 = vrot.lane.b32.xlu0 %v279, 32
    %v282 = vpop.permute.xlu0 %281
    %v284 = vadd.f32 %v274, %v282
    %v285 = vtanh.pop %v284
    %287 = vrot.lane.b32.xlu0 %v285, 64
    %v288 = vpop.permute.xlu0 %287
    %v290 = vmul.f32 %v273, %v288
    %292 = vrot.lane.b32.xlu0 %v290, 32
    %v293 = vpop.permute.xlu0 %292
    %295 = vst.msk [vmem:[#allocation3] sm:$0xff] %vm128, %v293
    %s296 = scalar_lea.vmem [#allocation2], 8
    %v297 = vld [vmem:[%s296] sm:$0xff]
    %v298 = vpack.c.bf16 %v290, %v290
    %300 = vrot.lane.b32.xlu0 %v298, 32
    %v301 = vpop.permute.xlu0 %300
    %v303 = vsel %vm128, %v301, 0
    %305 = vmatprep.subr.bf16.mxu0 0
    %306 = vmatpush1.bf16.msra.mxu0 0
    %307 = vmatprep.subr.bf16.mxu0 0
    %308 = vmatpush1.bf16.msra.mxu0 0
    %309 = vmatprep.subr.bf16.mxu0 0
    %310 = vmatpush1.bf16.msra.mxu0 0
    %311 = vmatprep.subr.bf16.mxu0 0
    %312 = vmatpush1.bf16.msra.mxu0 0
    %313 = vmatprep.subr.bf16.mxu0 0
    %314 = vmatpush1.bf16.msra.mxu0 0
    %315 = vmatprep.subr.bf16.mxu0 0
    %316 = vmatpush1.bf16.msra.mxu0 0
    %317 = vmatprep.subr.bf16.mxu0 0
    %318 = vmatpush1.bf16.msra.mxu0 %v224
    %319 = vmatprep.subr.bf16.mxu0 0
    %320 = vmatpush1.bf16.msra.mxu0 %v223
    %321 = vmatprep.subr.bf16.mxu0 0
    %322 = vmatpush2.bf16.msra.mxu0 0
    %323 = vmatprep.subr.bf16.mxu0 0
    %324 = vmatpush2.bf16.msra.mxu0 0
    %325 = vmatprep.subr.bf16.mxu0 0
    %326 = vmatpush2.bf16.msra.mxu0 0
    %327 = vmatprep.subr.bf16.mxu0 0
    %328 = vmatpush2.bf16.msra.mxu0 0
    %329 = vmatprep.subr.bf16.mxu0 0
    %330 = vmatpush2.bf16.msra.mxu0 0
    %331 = vmatprep.subr.bf16.mxu0 0
    %332 = vmatpush2.bf16.msra.mxu0 0
    %333 = vmatprep.subr.bf16.mxu0 0
    %334 = vmatpush2.bf16.msra.mxu0 0
    %335 = vmatprep.subr.bf16.mxu0 0
    %336 = vmatpush2.bf16.msra.mxu0 0
    %337 = vmatprep.mubr.bf16.mxu0 0
    %338 = vmatmul.mubr.bf16.gmra.mxu0 %v303
    %v339 = vpop.f32.mrf.mxu0
    %v340 = vadd.f32 0.0, %v339
    %v341 = vpop.f32.mrf.mxu0
    %v342 = vpop.f32.mrf.mxu0
    %v343 = vpop.f32.mrf.mxu0
    %344 = vdwg.mxu0
    %v345 = vadd.f32 %v297, %v340
    %v346 = vtanh.pop %v345
    %v347 = vmul.f32 %v346, 0.5
    %v348 = vadd.f32 %v347, 0.5
    %v349 = vmul.f32 %v348, %v284
    %351 = vrot.lane.b32.xlu0 %v346, 64
    %v352 = vpop.permute.xlu0 %351
    %v354 = vmul.f32 %v348, %v352
    %356 = vrot.lane.b32.xlu0 %v354, 32
    %v357 = vpop.permute.xlu0 %356
    %v359 = vadd.f32 %v349, %v357
    %v360 = vtanh.pop %v359
    %362 = vrot.lane.b32.xlu0 %v360, 64
    %v363 = vpop.permute.xlu0 %362
    %v365 = vmul.f32 %v348, %v363
    %367 = vrot.lane.b32.xlu0 %v365, 32
    %v368 = vpop.permute.xlu0 %367
    %s370 = scalar_lea.vmem [#allocation3], 8
    %371 = vst.msk [vmem:[%s370] sm:$0xff] %vm128, %v368
    %s372 = scalar_lea.vmem [#allocation2], 16
    %v373 = vld [vmem:[%s372] sm:$0xff]
    %v374 = vpack.c.bf16 %v365, %v365
    %376 = vrot.lane.b32.xlu0 %v374, 32
    %v377 = vpop.permute.xlu0 %376
    %v379 = vsel %vm128, %v377, 0
    %381 = vmatprep.subr.bf16.mxu0 0
    %382 = vmatpush1.bf16.msra.mxu0 0
    %383 = vmatprep.subr.bf16.mxu0 0
    %384 = vmatpush1.bf16.msra.mxu0 0
    %385 = vmatprep.subr.bf16.mxu0 0
    %386 = vmatpush1.bf16.msra.mxu0 0
    %387 = vmatprep.subr.bf16.mxu0 0
    %388 = vmatpush1.bf16.msra.mxu0 0
    %389 = vmatprep.subr.bf16.mxu0 0
    %390 = vmatpush1.bf16.msra.mxu0 0
    %391 = vmatprep.subr.bf16.mxu0 0
    %392 = vmatpush1.bf16.msra.mxu0 0
    %393 = vmatprep.subr.bf16.mxu0 0
    %394 = vmatpush1.bf16.msra.mxu0 %v224
    %395 = vmatprep.subr.bf16.mxu0 0
    %396 = vmatpush1.bf16.msra.mxu0 %v223
    %397 = vmatprep.subr.bf16.mxu0 0
    %398 = vmatpush2.bf16.msra.mxu0 0
    %399 = vmatprep.subr.bf16.mxu0 0
    %400 = vmatpush2.bf16.msra.mxu0 0
    %401 = vmatprep.subr.bf16.mxu0 0
    %402 = vmatpush2.bf16.msra.mxu0 0
    %403 = vmatprep.subr.bf16.mxu0 0
    %404 = vmatpush2.bf16.msra.mxu0 0
    %405 = vmatprep.subr.bf16.mxu0 0
    %406 = vmatpush2.bf16.msra.mxu0 0
    %407 = vmatprep.subr.bf16.mxu0 0
    %408 = vmatpush2.bf16.msra.mxu0 0
    %409 = vmatprep.subr.bf16.mxu0 0
    %410 = vmatpush2.bf16.msra.mxu0 0
    %411 = vmatprep.subr.bf16.mxu0 0
    %412 = vmatpush2.bf16.msra.mxu0 0
    %413 = vmatprep.mubr.bf16.mxu0 0
    %414 = vmatmul.mubr.bf16.gmra.mxu0 %v379
    %v415 = vpop.f32.mrf.mxu0
    %v416 = vadd.f32 0.0, %v415
    %v417 = vpop.f32.mrf.mxu0
    %v418 = vpop.f32.mrf.mxu0
    %v419 = vpop.f32.mrf.mxu0
    %420 = vdwg.mxu0
    %v421 = vadd.f32 %v373, %v416
    %v422 = vtanh.pop %v421
    %v423 = vmul.f32 %v422, 0.5
    %v424 = vadd.f32 %v423, 0.5
    %v425 = vmul.f32 %v424, %v359
    %427 = vrot.lane.b32.xlu0 %v422, 64
    %v428 = vpop.permute.xlu0 %427
    %v430 = vmul.f32 %v424, %v428
    %432 = vrot.lane.b32.xlu0 %v430, 32
    %v433 = vpop.permute.xlu0 %432
    %v435 = vadd.f32 %v425, %v433
    %v436 = vtanh.pop %v435
    %438 = vrot.lane.b32.xlu0 %v436, 64
    %v439 = vpop.permute.xlu0 %438
    %v441 = vmul.f32 %v424, %v439
    %443 = vrot.lane.b32.xlu0 %v441, 32
    %v444 = vpop.permute.xlu0 %443
    %s446 = scalar_lea.vmem [#allocation3], 16
    %447 = vst.msk [vmem:[%s446] sm:$0xff] %vm128, %v444
    %s448 = scalar_lea.vmem [#allocation2], 24
    %v449 = vld [vmem:[%s448] sm:$0xff]
    %v450 = vpack.c.bf16 %v441, %v441
    %452 = vrot.lane.b32.xlu0 %v450, 32
    %v453 = vpop.permute.xlu0 %452
    %v455 = vsel %vm128, %v453, 0
    %457 = vmatprep.subr.bf16.mxu0 0
    %458 = vmatpush1.bf16.msra.mxu0 0
    %459 = vmatprep.subr.bf16.mxu0 0
    %460 = vmatpush1.bf16.msra.mxu0 0
    %461 = vmatprep.subr.bf16.mxu0 0
    %462 = vmatpush1.bf16.msra.mxu0 0
    %463 = vmatprep.subr.bf16.mxu0 0
    %464 = vmatpush1.bf16.msra.mxu0 0
    %465 = vmatprep.subr.bf16.mxu0 0
    %466 = vmatpush1.bf16.msra.mxu0 0
    %467 = vmatprep.subr.bf16.mxu0 0
    %468 = vmatpush1.bf16.msra.mxu0 0
    %469 = vmatprep.subr.bf16.mxu0 0
    %470 = vmatpush1.bf16.msra.mxu0 %v224
    %471 = vmatprep.subr.bf16.mxu0 0
    %472 = vmatpush1.bf16.msra.mxu0 %v223
    %473 = vmatprep.subr.bf16.mxu0 0
    %474 = vmatpush2.bf16.msra.mxu0 0
    %475 = vmatprep.subr.bf16.mxu0 0
    %476 = vmatpush2.bf16.msra.mxu0 0
    %477 = vmatprep.subr.bf16.mxu0 0
    %478 = vmatpush2.bf16.msra.mxu0 0
    %479 = vmatprep.subr.bf16.mxu0 0
    %480 = vmatpush2.bf16.msra.mxu0 0
    %481 = vmatprep.subr.bf16.mxu0 0
    %482 = vmatpush2.bf16.msra.mxu0 0
    %483 = vmatprep.subr.bf16.mxu0 0
    %484 = vmatpush2.bf16.msra.mxu0 0
    %485 = vmatprep.subr.bf16.mxu0 0
    %486 = vmatpush2.bf16.msra.mxu0 0
    %487 = vmatprep.subr.bf16.mxu0 0
    %488 = vmatpush2.bf16.msra.mxu0 0
    %489 = vmatprep.mubr.bf16.mxu0 0
    %490 = vmatmul.mubr.bf16.gmra.mxu0 %v455
    %v491 = vpop.f32.mrf.mxu0
    %v492 = vadd.f32 0.0, %v491
    %v493 = vpop.f32.mrf.mxu0
    %v494 = vpop.f32.mrf.mxu0
    %v495 = vpop.f32.mrf.mxu0
    %496 = vdwg.mxu0
    %v497 = vadd.f32 %v449, %v492
    %v498 = vtanh.pop %v497
    %v499 = vmul.f32 %v498, 0.5
    %v500 = vadd.f32 %v499, 0.5
    %v501 = vmul.f32 %v500, %v435
    %503 = vrot.lane.b32.xlu0 %v498, 64
    %v504 = vpop.permute.xlu0 %503
    %v506 = vmul.f32 %v500, %v504
    %508 = vrot.lane.b32.xlu0 %v506, 32
    %v509 = vpop.permute.xlu0 %508
    %v511 = vadd.f32 %v501, %v509
    %v512 = vtanh.pop %v511
    %514 = vrot.lane.b32.xlu0 %v512, 64
    %v515 = vpop.permute.xlu0 %514
    %v517 = vmul.f32 %v500, %v515
    %519 = vrot.lane.b32.xlu0 %v517, 32
    %v520 = vpop.permute.xlu0 %519
    %s522 = scalar_lea.vmem [#allocation3], 24
    %523 = vst.msk [vmem:[%s522] sm:$0xff] %vm128, %v520
    %s524 = scalar_lea.vmem [#allocation2], 32
    %v525 = vld [vmem:[%s524] sm:$0xff]
    %v526 = vpack.c.bf16 %v517, %v517
    %528 = vrot.lane.b32.xlu0 %v526, 32
    %v529 = vpop.permute.xlu0 %528
    %v531 = vsel %vm128, %v529, 0
    %533 = vmatprep.subr.bf16.mxu0 0
    %534 = vmatpush1.bf16.msra.mxu0 0
    %535 = vmatprep.subr.bf16.mxu0 0
    %536 = vmatpush1.bf16.msra.mxu0 0
    %537 = vmatprep.subr.bf16.mxu0 0
    %538 = vmatpush1.bf16.msra.mxu0 0
    %539 = vmatprep.subr.bf16.mxu0 0
    %540 = vmatpush1.bf16.msra.mxu0 0
    %541 = vmatprep.subr.bf16.mxu0 0
    %542 = vmatpush1.bf16.msra.mxu0 0
    %543 = vmatprep.subr.bf16.mxu0 0
    %544 = vmatpush1.bf16.msra.mxu0 0
    %545 = vmatprep.subr.bf16.mxu0 0
    %546 = vmatpush1.bf16.msra.mxu0 %v224
    %547 = vmatprep.subr.bf16.mxu0 0
    %548 = vmatpush1.bf16.msra.mxu0 %v223
    %549 = vmatprep.subr.bf16.mxu0 0
    %550 = vmatpush2.bf16.msra.mxu0 0
    %551 = vmatprep.subr.bf16.mxu0 0
    %552 = vmatpush2.bf16.msra.mxu0 0
    %553 = vmatprep.subr.bf16.mxu0 0
    %554 = vmatpush2.bf16.msra.mxu0 0
    %555 = vmatprep.subr.bf16.mxu0 0
    %556 = vmatpush2.bf16.msra.mxu0 0
    %557 = vmatprep.subr.bf16.mxu0 0
    %558 = vmatpush2.bf16.msra.mxu0 0
    %559 = vmatprep.subr.bf16.mxu0 0
    %560 = vmatpush2.bf16.msra.mxu0 0
    %561 = vmatprep.subr.bf16.mxu0 0
    %562 = vmatpush2.bf16.msra.mxu0 0
    %563 = vmatprep.subr.bf16.mxu0 0
    %564 = vmatpush2.bf16.msra.mxu0 0
    %565 = vmatprep.mubr.bf16.mxu0 0
    %566 = vmatmul.mubr.bf16.gmra.mxu0 %v531
    %v567 = vpop.f32.mrf.mxu0
    %v568 = vadd.f32 0.0, %v567
    %v569 = vpop.f32.mrf.mxu0
    %v570 = vpop.f32.mrf.mxu0
    %v571 = vpop.f32.mrf.mxu0
    %572 = vdwg.mxu0
    %v573 = vadd.f32 %v525, %v568
    %v574 = vtanh.pop %v573
    %v575 = vmul.f32 %v574, 0.5
    %v576 = vadd.f32 %v575, 0.5
    %v577 = vmul.f32 %v576, %v511
    %579 = vrot.lane.b32.xlu0 %v574, 64
    %v580 = vpop.permute.xlu0 %579
    %v582 = vmul.f32 %v576, %v580
    %584 = vrot.lane.b32.xlu0 %v582, 32
    %v585 = vpop.permute.xlu0 %584
    %v587 = vadd.f32 %v577, %v585
    %v588 = vtanh.pop %v587
    %590 = vrot.lane.b32.xlu0 %v588, 64
    %v591 = vpop.permute.xlu0 %590
    %v593 = vmul.f32 %v576, %v591
    %595 = vrot.lane.b32.xlu0 %v593, 32
    %v596 = vpop.permute.xlu0 %595
    %s598 = scalar_lea.vmem [#allocation3], 32
    %599 = vst.msk [vmem:[%s598] sm:$0xff] %vm128, %v596
    %s600 = scalar_lea.vmem [#allocation2], 40
    %v601 = vld [vmem:[%s600] sm:$0xff]
    %v602 = vpack.c.bf16 %v593, %v593
    %604 = vrot.lane.b32.xlu0 %v602, 32
    %v605 = vpop.permute.xlu0 %604
    %v607 = vsel %vm128, %v605, 0
    %609 = vmatprep.subr.bf16.mxu0 0
    %610 = vmatpush1.bf16.msra.mxu0 0
    %611 = vmatprep.subr.bf16.mxu0 0
    %612 = vmatpush1.bf16.msra.mxu0 0
    %613 = vmatprep.subr.bf16.mxu0 0
    %614 = vmatpush1.bf16.msra.mxu0 0
    %615 = vmatprep.subr.bf16.mxu0 0
    %616 = vmatpush1.bf16.msra.mxu0 0
    %617 = vmatprep.subr.bf16.mxu0 0
    %618 = vmatpush1.bf16.msra.mxu0 0
    %619 = vmatprep.subr.bf16.mxu0 0
    %620 = vmatpush1.bf16.msra.mxu0 0
    %621 = vmatprep.subr.bf16.mxu0 0
    %622 = vmatpush1.bf16.msra.mxu0 %v224
    %623 = vmatprep.subr.bf16.mxu0 0
    %624 = vmatpush1.bf16.msra.mxu0 %v223
    %625 = vmatprep.subr.bf16.mxu0 0
    %626 = vmatpush2.bf16.msra.mxu0 0
    %627 = vmatprep.subr.bf16.mxu0 0
    %628 = vmatpush2.bf16.msra.mxu0 0
    %629 = vmatprep.subr.bf16.mxu0 0
    %630 = vmatpush2.bf16.msra.mxu0 0
    %631 = vmatprep.subr.bf16.mxu0 0
    %632 = vmatpush2.bf16.msra.mxu0 0
    %633 = vmatprep.subr.bf16.mxu0 0
    %634 = vmatpush2.bf16.msra.mxu0 0
    %635 = vmatprep.subr.bf16.mxu0 0
    %636 = vmatpush2.bf16.msra.mxu0 0
    %637 = vmatprep.subr.bf16.mxu0 0
    %638 = vmatpush2.bf16.msra.mxu0 0
    %639 = vmatprep.subr.bf16.mxu0 0
    %640 = vmatpush2.bf16.msra.mxu0 0
    %641 = vmatprep.mubr.bf16.mxu0 0
    %642 = vmatmul.mubr.bf16.gmra.mxu0 %v607
    %v643 = vpop.f32.mrf.mxu0
    %v644 = vadd.f32 0.0, %v643
    %v645 = vpop.f32.mrf.mxu0
    %v646 = vpop.f32.mrf.mxu0
    %v647 = vpop.f32.mrf.mxu0
    %648 = vdwg.mxu0
    %v649 = vadd.f32 %v601, %v644
    %v650 = vtanh.pop %v649
    %v651 = vmul.f32 %v650, 0.5
    %v652 = vadd.f32 %v651, 0.5
    %v653 = vmul.f32 %v652, %v587
    %655 = vrot.lane.b32.xlu0 %v650, 64
    %v656 = vpop.permute.xlu0 %655
    %v658 = vmul.f32 %v652, %v656
    %660 = vrot.lane.b32.xlu0 %v658, 32
    %v661 = vpop.permute.xlu0 %660
    %v663 = vadd.f32 %v653, %v661
    %v664 = vtanh.pop %v663
    %666 = vrot.lane.b32.xlu0 %v664, 64
    %v667 = vpop.permute.xlu0 %666
    %v669 = vmul.f32 %v652, %v667
    %671 = vrot.lane.b32.xlu0 %v669, 32
    %v672 = vpop.permute.xlu0 %671
    %s674 = scalar_lea.vmem [#allocation3], 40
    %675 = vst.msk [vmem:[%s674] sm:$0xff] %vm128, %v672
    %s676 = scalar_lea.vmem [#allocation2], 48
    %v677 = vld [vmem:[%s676] sm:$0xff]
    %v678 = vpack.c.bf16 %v669, %v669
    %680 = vrot.lane.b32.xlu0 %v678, 32
    %v681 = vpop.permute.xlu0 %680
    %v683 = vsel %vm128, %v681, 0
    %685 = vmatprep.subr.bf16.mxu0 0
    %686 = vmatpush1.bf16.msra.mxu0 0
    %687 = vmatprep.subr.bf16.mxu0 0
    %688 = vmatpush1.bf16.msra.mxu0 0
    %689 = vmatprep.subr.bf16.mxu0 0
    %690 = vmatpush1.bf16.msra.mxu0 0
    %691 = vmatprep.subr.bf16.mxu0 0
    %692 = vmatpush1.bf16.msra.mxu0 0
    %693 = vmatprep.subr.bf16.mxu0 0
    %694 = vmatpush1.bf16.msra.mxu0 0
    %695 = vmatprep.subr.bf16.mxu0 0
    %696 = vmatpush1.bf16.msra.mxu0 0
    %697 = vmatprep.subr.bf16.mxu0 0
    %698 = vmatpush1.bf16.msra.mxu0 %v224
    %699 = vmatprep.subr.bf16.mxu0 0
    %700 = vmatpush1.bf16.msra.mxu0 %v223
    %701 = vmatprep.subr.bf16.mxu0 0
    %702 = vmatpush2.bf16.msra.mxu0 0
    %703 = vmatprep.subr.bf16.mxu0 0
    %704 = vmatpush2.bf16.msra.mxu0 0
    %705 = vmatprep.subr.bf16.mxu0 0
    %706 = vmatpush2.bf16.msra.mxu0 0
    %707 = vmatprep.subr.bf16.mxu0 0
    %708 = vmatpush2.bf16.msra.mxu0 0
    %709 = vmatprep.subr.bf16.mxu0 0
    %710 = vmatpush2.bf16.msra.mxu0 0
    %711 = vmatprep.subr.bf16.mxu0 0
    %712 = vmatpush2.bf16.msra.mxu0 0
    %713 = vmatprep.subr.bf16.mxu0 0
    %714 = vmatpush2.bf16.msra.mxu0 0
    %715 = vmatprep.subr.bf16.mxu0 0
    %716 = vmatpush2.bf16.msra.mxu0 0
    %717 = vmatprep.mubr.bf16.mxu0 0
    %718 = vmatmul.mubr.bf16.gmra.mxu0 %v683
    %v719 = vpop.f32.mrf.mxu0
    %v720 = vadd.f32 0.0, %v719
    %v721 = vpop.f32.mrf.mxu0
    %v722 = vpop.f32.mrf.mxu0
    %v723 = vpop.f32.mrf.mxu0
    %724 = vdwg.mxu0
    %v725 = vadd.f32 %v677, %v720
    %v726 = vtanh.pop %v725
    %v727 = vmul.f32 %v726, 0.5
    %v728 = vadd.f32 %v727, 0.5
    %v729 = vmul.f32 %v728, %v663
    %731 = vrot.lane.b32.xlu0 %v726, 64
    %v732 = vpop.permute.xlu0 %731
    %v734 = vmul.f32 %v728, %v732
    %736 = vrot.lane.b32.xlu0 %v734, 32
    %v737 = vpop.permute.xlu0 %736
    %v739 = vadd.f32 %v729, %v737
    %v740 = vtanh.pop %v739
    %742 = vrot.lane.b32.xlu0 %v740, 64
    %v743 = vpop.permute.xlu0 %742
    %v745 = vmul.f32 %v728, %v743
    %747 = vrot.lane.b32.xlu0 %v745, 32
    %v748 = vpop.permute.xlu0 %747
    %s750 = scalar_lea.vmem [#allocation3], 48
    %751 = vst.msk [vmem:[%s750] sm:$0xff] %vm128, %v748
    %s752 = scalar_lea.vmem [#allocation2], 56
    %v753 = vld [vmem:[%s752] sm:$0xff]
    %v754 = vpack.c.bf16 %v745, %v745
    %756 = vrot.lane.b32.xlu0 %v754, 32
    %v757 = vpop.permute.xlu0 %756
    %v759 = vsel %vm128, %v757, 0
    %761 = vmatprep.subr.bf16.mxu0 0
    %762 = vmatpush1.bf16.msra.mxu0 0
    %763 = vmatprep.subr.bf16.mxu0 0
    %764 = vmatpush1.bf16.msra.mxu0 0
    %765 = vmatprep.subr.bf16.mxu0 0
    %766 = vmatpush1.bf16.msra.mxu0 0
    %767 = vmatprep.subr.bf16.mxu0 0
    %768 = vmatpush1.bf16.msra.mxu0 0
    %769 = vmatprep.subr.bf16.mxu0 0
    %770 = vmatpush1.bf16.msra.mxu0 0
    %771 = vmatprep.subr.bf16.mxu0 0
    %772 = vmatpush1.bf16.msra.mxu0 0
    %773 = vmatprep.subr.bf16.mxu0 0
    %774 = vmatpush1.bf16.msra.mxu0 %v224
    %775 = vmatprep.subr.bf16.mxu0 0
    %776 = vmatpush1.bf16.msra.mxu0 %v223
    %777 = vmatprep.subr.bf16.mxu0 0
    %778 = vmatpush2.bf16.msra.mxu0 0
    %779 = vmatprep.subr.bf16.mxu0 0
    %780 = vmatpush2.bf16.msra.mxu0 0
    %781 = vmatprep.subr.bf16.mxu0 0
    %782 = vmatpush2.bf16.msra.mxu0 0
    %783 = vmatprep.subr.bf16.mxu0 0
    %784 = vmatpush2.bf16.msra.mxu0 0
    %785 = vmatprep.subr.bf16.mxu0 0
    %786 = vmatpush2.bf16.msra.mxu0 0
    %787 = vmatprep.subr.bf16.mxu0 0
    %788 = vmatpush2.bf16.msra.mxu0 0
    %789 = vmatprep.subr.bf16.mxu0 0
    %790 = vmatpush2.bf16.msra.mxu0 0
    %791 = vmatprep.subr.bf16.mxu0 0
    %792 = vmatpush2.bf16.msra.mxu0 0
    %793 = vmatprep.mubr.bf16.mxu0 0
    %794 = vmatmul.mubr.bf16.gmra.mxu0 %v759
    %v795 = vpop.f32.mrf.mxu0
    %v796 = vadd.f32 0.0, %v795
    %v797 = vpop.f32.mrf.mxu0
    %v798 = vpop.f32.mrf.mxu0
    %v799 = vpop.f32.mrf.mxu0
    %800 = vdwg.mxu0
    %v801 = vadd.f32 %v753, %v796
    %v802 = vtanh.pop %v801
    %v803 = vmul.f32 %v802, 0.5
    %v804 = vadd.f32 %v803, 0.5
    %v805 = vmul.f32 %v804, %v739
    %807 = vrot.lane.b32.xlu0 %v802, 64
    %v808 = vpop.permute.xlu0 %807
    %v810 = vmul.f32 %v804, %v808
    %812 = vrot.lane.b32.xlu0 %v810, 32
    %v813 = vpop.permute.xlu0 %812
    %v815 = vadd.f32 %v805, %v813
    %v816 = vtanh.pop %v815
    %818 = vrot.lane.b32.xlu0 %v816, 64
    %v819 = vpop.permute.xlu0 %818
    %v821 = vmul.f32 %v804, %v819
    %823 = vrot.lane.b32.xlu0 %v821, 32
    %v824 = vpop.permute.xlu0 %823
    %s826 = scalar_lea.vmem [#allocation3], 56
    %827 = vst.msk [vmem:[%s826] sm:$0xff] %vm128, %v824
    %828 = vst.msk [vmem:[#allocation4] sm:$0xff] %vm128, %v824
    %vm829 = vcmask 523520
    %830 = vst.msk [vmem:[#allocation4] sm:$0xff] %vm829, %v815
    %v831 = vld [vmem:[#allocation10] sm:$0xf]
    %v832 = vld [vmem:[#allocation10 + $0x4] sm:$0xf]
    %v833 = vld [vmem:[#allocation10 + $0x8] sm:$0xf]
    %v834 = vld [vmem:[#allocation10 + $0xc] sm:$0xf]
    %v835 = vld [vmem:[#allocation10 + $0x10] sm:$0xf]
    %v836 = vld [vmem:[#allocation10 + $0x14] sm:$0xf]
    %v837 = vld [vmem:[#allocation10 + $0x18] sm:$0xf]
    %v838 = vld [vmem:[#allocation10 + $0x1c] sm:$0xf]
    %v839 = vld [vmem:[#allocation10 + $0x20] sm:$0x1]
    %v840 = vunpack.c.l.bf16 %v839
    %v841 = vld [vmem:[#allocation3] sm:$0xff]
    %v842 = vld [vmem:[#allocation3 + $0x8] sm:$0xff]
    %v843 = vld [vmem:[#allocation3 + $0x10] sm:$0xff]
    %v844 = vld [vmem:[#allocation3 + $0x18] sm:$0xff]
    %v845 = vld [vmem:[#allocation3 + $0x20] sm:$0xff]
    %v846 = vld [vmem:[#allocation3 + $0x28] sm:$0xff]
    %v847 = vld [vmem:[#allocation3 + $0x30] sm:$0xff]
    %v848 = vld [vmem:[#allocation3 + $0x38] sm:$0xff]
    %v849 = vpack.c.bf16 %v842, %v841
    %v850 = vpack.c.bf16 %v844, %v843
    %v851 = vpack.c.bf16 %v846, %v845
    %v852 = vpack.c.bf16 %v848, %v847
    %v853 = vlaneseq
    %v854 = vshrl.u32 %v853, 7
    %v855 = vsub.s32 0, %v854
    %v856 = vrot.slane %v840, %v855
    %v861 = vunpack.c.l.b16 %v831
    %v862 = vunpack.c.l.b16 %v832
    %v863 = vunpack.c.l.b16 %v833
    %v864 = vunpack.c.l.b16 %v834
    %v865 = vpack.c.b16 %v862, %v861
    %v866 = vpack.c.b16 %v864, %v863
    %v870 = vsel %vm128, %v849, 0
    %v873 = vsel %vm128, %v850, 0
    %v876 = vsel %vm128, %v851, 0
    %v879 = vsel %vm128, %v852, 0
    %881 = vmatprep.subr.bf16.mxu0 0
    %882 = vmatpush1.bf16.msra.mxu0 0
    %883 = vmatprep.subr.bf16.mxu0 0
    %884 = vmatpush1.bf16.msra.mxu0 0
    %885 = vmatprep.subr.bf16.mxu0 0
    %886 = vmatpush1.bf16.msra.mxu0 0
    %887 = vmatprep.subr.bf16.mxu0 0
    %888 = vmatpush1.bf16.msra.mxu0 0
    %889 = vmatprep.subr.bf16.mxu0 0
    %890 = vmatpush1.bf16.msra.mxu0 0
    %891 = vmatprep.subr.bf16.mxu0 0
    %892 = vmatpush1.bf16.msra.mxu0 0
    %893 = vmatprep.subr.bf16.mxu0 0
    %894 = vmatpush1.bf16.msra.mxu0 %v866
    %895 = vmatprep.subr.bf16.mxu0 0
    %896 = vmatpush1.bf16.msra.mxu0 %v865
    %897 = vmatprep.subr.bf16.mxu0 0
    %898 = vmatpush2.bf16.msra.mxu0 0
    %899 = vmatprep.subr.bf16.mxu0 0
    %900 = vmatpush2.bf16.msra.mxu0 0
    %901 = vmatprep.subr.bf16.mxu0 0
    %902 = vmatpush2.bf16.msra.mxu0 0
    %903 = vmatprep.subr.bf16.mxu0 0
    %904 = vmatpush2.bf16.msra.mxu0 0
    %905 = vmatprep.subr.bf16.mxu0 0
    %906 = vmatpush2.bf16.msra.mxu0 0
    %907 = vmatprep.subr.bf16.mxu0 0
    %908 = vmatpush2.bf16.msra.mxu0 0
    %909 = vmatprep.subr.bf16.mxu0 0
    %910 = vmatpush2.bf16.msra.mxu0 0
    %911 = vmatprep.subr.bf16.mxu0 0
    %912 = vmatpush2.bf16.msra.mxu0 0
    %913 = vmatprep.mubr.bf16.mxu0 0
    %914 = vmatmul.mubr.bf16.gmra.mxu0 %v870
    %v915 = vpop.f32.mrf.mxu0
    %v916 = vadd.f32 %v856, %v915
    %v917 = vpop.f32.mrf.mxu0
    %v918 = vpop.f32.mrf.mxu0
    %v919 = vadd.f32 %v856, %v918
    %v920 = vpop.f32.mrf.mxu0
    %921 = vmatprep.mubr.bf16.mxu0 0
    %922 = vmatmul.mubr.bf16.gmra.mxu0 %v873
    %v923 = vpop.f32.mrf.mxu0
    %v924 = vadd.f32 %v856, %v923
    %v925 = vpop.f32.mrf.mxu0
    %v926 = vpop.f32.mrf.mxu0
    %v927 = vadd.f32 %v856, %v926
    %v928 = vpop.f32.mrf.mxu0
    %929 = vmatprep.mubr.bf16.mxu0 0
    %930 = vmatmul.mubr.bf16.gmra.mxu0 %v876
    %v931 = vpop.f32.mrf.mxu0
    %v932 = vadd.f32 %v856, %v931
    %v933 = vpop.f32.mrf.mxu0
    %v934 = vpop.f32.mrf.mxu0
    %v935 = vadd.f32 %v856, %v934
    %v936 = vpop.f32.mrf.mxu0
    %937 = vmatprep.mubr.bf16.mxu0 0
    %938 = vmatmul.mubr.bf16.gmra.mxu0 %v879
    %v939 = vpop.f32.mrf.mxu0
    %v940 = vadd.f32 %v856, %v939
    %v941 = vpop.f32.mrf.mxu0
    %v942 = vpop.f32.mrf.mxu0
    %v943 = vadd.f32 %v856, %v942
    %v944 = vpop.f32.mrf.mxu0
    %945 = vdwg.mxu0
    %946 = vst [vmem:[#allocation2] sm:$0xff] %v916
    %947 = vst [vmem:[#allocation2 + $0x8] sm:$0xff] %v919
    %948 = vst [vmem:[#allocation2 + $0x10] sm:$0xff] %v924
    %949 = vst [vmem:[#allocation2 + $0x18] sm:$0xff] %v927
    %950 = vst [vmem:[#allocation2 + $0x20] sm:$0xff] %v932
    %951 = vst [vmem:[#allocation2 + $0x28] sm:$0xff] %v935
    %952 = vst [vmem:[#allocation2 + $0x30] sm:$0xff] %v940
    %953 = vst [vmem:[#allocation2 + $0x38] sm:$0xff] %v943
    %v954 = vld [vmem:[#allocation2] sm:$0xff]
    %v959 = vunpack.c.l.b16 %v835
    %v960 = vunpack.c.l.b16 %v836
    %v961 = vunpack.c.l.b16 %v837
    %v962 = vunpack.c.l.b16 %v838
    %v963 = vpack.c.b16 %v960, %v959
    %v964 = vpack.c.b16 %v962, %v961
    %967 = vmatprep.subr.bf16.mxu0 0
    %968 = vmatpush1.bf16.msra.mxu0 0
    %969 = vmatprep.subr.bf16.mxu0 0
    %970 = vmatpush1.bf16.msra.mxu0 0
    %971 = vmatprep.subr.bf16.mxu0 0
    %972 = vmatpush1.bf16.msra.mxu0 0
    %973 = vmatprep.subr.bf16.mxu0 0
    %974 = vmatpush1.bf16.msra.mxu0 0
    %975 = vmatprep.subr.bf16.mxu0 0
    %976 = vmatpush1.bf16.msra.mxu0 0
    %977 = vmatprep.subr.bf16.mxu0 0
    %978 = vmatpush1.bf16.msra.mxu0 0
    %979 = vmatprep.subr.bf16.mxu0 0
    %980 = vmatpush1.bf16.msra.mxu0 %v964
    %981 = vmatprep.subr.bf16.mxu0 0
    %982 = vmatpush1.bf16.msra.mxu0 %v963
    %983 = vmatprep.subr.bf16.mxu0 0
    %984 = vmatpush2.bf16.msra.mxu0 0
    %985 = vmatprep.subr.bf16.mxu0 0
    %986 = vmatpush2.bf16.msra.mxu0 0
    %987 = vmatprep.subr.bf16.mxu0 0
    %988 = vmatpush2.bf16.msra.mxu0 0
    %989 = vmatprep.subr.bf16.mxu0 0
    %990 = vmatpush2.bf16.msra.mxu0 0
    %991 = vmatprep.subr.bf16.mxu0 0
    %992 = vmatpush2.bf16.msra.mxu0 0
    %993 = vmatprep.subr.bf16.mxu0 0
    %994 = vmatpush2.bf16.msra.mxu0 0
    %995 = vmatprep.subr.bf16.mxu0 0
    %996 = vmatpush2.bf16.msra.mxu0 0
    %997 = vmatprep.subr.bf16.mxu0 0
    %998 = vmatpush2.bf16.msra.mxu0 0
    %999 = vmatprep.mubr.bf16.mxu0 0
    %1000 = vmatmul.mubr.bf16.gmra.mxu0 %v228
    %v1001 = vpop.f32.mrf.mxu0
    %v1002 = vadd.f32 0.0, %v1001
    %v1003 = vpop.f32.mrf.mxu0
    %v1004 = vpop.f32.mrf.mxu0
    %v1005 = vpop.f32.mrf.mxu0
    %1006 = vdwg.mxu0
    %v1007 = vadd.f32 %v954, %v1002
    %v1008 = vtanh.pop %v1007
    %v1009 = vmul.f32 %v1008, 0.5
    %v1010 = vadd.f32 %v1009, 0.5
    %v1011 = vmul.f32 %v1010, 0.0
    %1013 = vrot.lane.b32.xlu0 %v1008, 64
    %v1014 = vpop.permute.xlu0 %1013
    %v1016 = vmul.f32 %v1010, %v1014
    %1018 = vrot.lane.b32.xlu0 %v1016, 32
    %v1019 = vpop.permute.xlu0 %1018
    %v1021 = vadd.f32 %v1011, %v1019
    %v1022 = vtanh.pop %v1021
    %1024 = vrot.lane.b32.xlu0 %v1022, 64
    %v1025 = vpop.permute.xlu0 %1024
    %v1027 = vmul.f32 %v1010, %v1025
    %v1028 = vld [vmem:[%s296] sm:$0xff]
    %v1029 = vpack.c.bf16 %v1027, %v1027
    %1031 = vrot.lane.b32.xlu0 %v1029, 32
    %v1032 = vpop.permute.xlu0 %1031
    %v1034 = vsel %vm128, %v1032, 0
    %1036 = vmatprep.subr.bf16.mxu0 0
    %1037 = vmatpush1.bf16.msra.mxu0 0
    %1038 = vmatprep.subr.bf16.mxu0 0
    %1039 = vmatpush1.bf16.msra.mxu0 0
    %1040 = vmatprep.subr.bf16.mxu0 0
    %1041 = vmatpush1.bf16.msra.mxu0 0
    %1042 = vmatprep.subr.bf16.mxu0 0
    %1043 = vmatpush1.bf16.msra.mxu0 0
    %1044 = vmatprep.subr.bf16.mxu0 0
    %1045 = vmatpush1.bf16.msra.mxu0 0
    %1046 = vmatprep.subr.bf16.mxu0 0
    %1047 = vmatpush1.bf16.msra.mxu0 0
    %1048 = vmatprep.subr.bf16.mxu0 0
    %1049 = vmatpush1.bf16.msra.mxu0 %v964
    %1050 = vmatprep.subr.bf16.mxu0 0
    %1051 = vmatpush1.bf16.msra.mxu0 %v963
    %1052 = vmatprep.subr.bf16.mxu0 0
    %1053 = vmatpush2.bf16.msra.mxu0 0
    %1054 = vmatprep.subr.bf16.mxu0 0
    %1055 = vmatpush2.bf16.msra.mxu0 0
    %1056 = vmatprep.subr.bf16.mxu0 0
    %1057 = vmatpush2.bf16.msra.mxu0 0
    %1058 = vmatprep.subr.bf16.mxu0 0
    %1059 = vmatpush2.bf16.msra.mxu0 0
    %1060 = vmatprep.subr.bf16.mxu0 0
    %1061 = vmatpush2.bf16.msra.mxu0 0
    %1062 = vmatprep.subr.bf16.mxu0 0
    %1063 = vmatpush2.bf16.msra.mxu0 0
    %1064 = vmatprep.subr.bf16.mxu0 0
    %1065 = vmatpush2.bf16.msra.mxu0 0
    %1066 = vmatprep.subr.bf16.mxu0 0
    %1067 = vmatpush2.bf16.msra.mxu0 0
    %1068 = vmatprep.mubr.bf16.mxu0 0
    %1069 = vmatmul.mubr.bf16.gmra.mxu0 %v1034
    %v1070 = vpop.f32.mrf.mxu0
    %v1071 = vadd.f32 0.0, %v1070
    %v1072 = vpop.f32.mrf.mxu0
    %v1073 = vpop.f32.mrf.mxu0
    %v1074 = vpop.f32.mrf.mxu0
    %1075 = vdwg.mxu0
    %v1076 = vadd.f32 %v1028, %v1071
    %v1077 = vtanh.pop %v1076
    %v1078 = vmul.f32 %v1077, 0.5
    %v1079 = vadd.f32 %v1078, 0.5
    %v1080 = vmul.f32 %v1079, %v1021
    %1082 = vrot.lane.b32.xlu0 %v1077, 64
    %v1083 = vpop.permute.xlu0 %1082
    %v1085 = vmul.f32 %v1079, %v1083
    %1087 = vrot.lane.b32.xlu0 %v1085, 32
    %v1088 = vpop.permute.xlu0 %1087
    %v1090 = vadd.f32 %v1080, %v1088
    %v1091 = vtanh.pop %v1090
    %1093 = vrot.lane.b32.xlu0 %v1091, 64
    %v1094 = vpop.permute.xlu0 %1093
    %v1096 = vmul.f32 %v1079, %v1094
    %v1097 = vld [vmem:[%s372] sm:$0xff]
    %v1098 = vpack.c.bf16 %v1096, %v1096
    %1100 = vrot.lane.b32.xlu0 %v1098, 32
    %v1101 = vpop.permute.xlu0 %1100
    %v1103 = vsel %vm128, %v1101, 0
    %1105 = vmatprep.subr.bf16.mxu0 0
    %1106 = vmatpush1.bf16.msra.mxu0 0
    %1107 = vmatprep.subr.bf16.mxu0 0
    %1108 = vmatpush1.bf16.msra.mxu0 0
    %1109 = vmatprep.subr.bf16.mxu0 0
    %1110 = vmatpush1.bf16.msra.mxu0 0
    %1111 = vmatprep.subr.bf16.mxu0 0
    %1112 = vmatpush1.bf16.msra.mxu0 0
    %1113 = vmatprep.subr.bf16.mxu0 0
    %1114 = vmatpush1.bf16.msra.mxu0 0
    %1115 = vmatprep.subr.bf16.mxu0 0
    %1116 = vmatpush1.bf16.msra.mxu0 0
    %1117 = vmatprep.subr.bf16.mxu0 0
    %1118 = vmatpush1.bf16.msra.mxu0 %v964
    %1119 = vmatprep.subr.bf16.mxu0 0
    %1120 = vmatpush1.bf16.msra.mxu0 %v963
    %1121 = vmatprep.subr.bf16.mxu0 0
    %1122 = vmatpush2.bf16.msra.mxu0 0
    %1123 = vmatprep.subr.bf16.mxu0 0
    %1124 = vmatpush2.bf16.msra.mxu0 0
    %1125 = vmatprep.subr.bf16.mxu0 0
    %1126 = vmatpush2.bf16.msra.mxu0 0
    %1127 = vmatprep.subr.bf16.mxu0 0
    %1128 = vmatpush2.bf16.msra.mxu0 0
    %1129 = vmatprep.subr.bf16.mxu0 0
    %1130 = vmatpush2.bf16.msra.mxu0 0
    %1131 = vmatprep.subr.bf16.mxu0 0
    %1132 = vmatpush2.bf16.msra.mxu0 0
    %1133 = vmatprep.subr.bf16.mxu0 0
    %1134 = vmatpush2.bf16.msra.mxu0 0
    %1135 = vmatprep.subr.bf16.mxu0 0
    %1136 = vmatpush2.bf16.msra.mxu0 0
    %1137 = vmatprep.mubr.bf16.mxu0 0
    %1138 = vmatmul.mubr.bf16.gmra.mxu0 %v1103
    %v1139 = vpop.f32.mrf.mxu0
    %v1140 = vadd.f32 0.0, %v1139
    %v1141 = vpop.f32.mrf.mxu0
    %v1142 = vpop.f32.mrf.mxu0
    %v1143 = vpop.f32.mrf.mxu0
    %1144 = vdwg.mxu0
    %v1145 = vadd.f32 %v1097, %v1140
    %v1146 = vtanh.pop %v1145
    %v1147 = vmul.f32 %v1146, 0.5
    %v1148 = vadd.f32 %v1147, 0.5
    %v1149 = vmul.f32 %v1148, %v1090
    %1151 = vrot.lane.b32.xlu0 %v1146, 64
    %v1152 = vpop.permute.xlu0 %1151
    %v1154 = vmul.f32 %v1148, %v1152
    %1156 = vrot.lane.b32.xlu0 %v1154, 32
    %v1157 = vpop.permute.xlu0 %1156
    %v1159 = vadd.f32 %v1149, %v1157
    %v1160 = vtanh.pop %v1159
    %1162 = vrot.lane.b32.xlu0 %v1160, 64
    %v1163 = vpop.permute.xlu0 %1162
    %v1165 = vmul.f32 %v1148, %v1163
    %v1166 = vld [vmem:[%s448] sm:$0xff]
    %v1167 = vpack.c.bf16 %v1165, %v1165
    %1169 = vrot.lane.b32.xlu0 %v1167, 32
    %v1170 = vpop.permute.xlu0 %1169
    %v1172 = vsel %vm128, %v1170, 0
    %1174 = vmatprep.subr.bf16.mxu0 0
    %1175 = vmatpush1.bf16.msra.mxu0 0
    %1176 = vmatprep.subr.bf16.mxu0 0
    %1177 = vmatpush1.bf16.msra.mxu0 0
    %1178 = vmatprep.subr.bf16.mxu0 0
    %1179 = vmatpush1.bf16.msra.mxu0 0
    %1180 = vmatprep.subr.bf16.mxu0 0
    %1181 = vmatpush1.bf16.msra.mxu0 0
    %1182 = vmatprep.subr.bf16.mxu0 0
    %1183 = vmatpush1.bf16.msra.mxu0 0
    %1184 = vmatprep.subr.bf16.mxu0 0
    %1185 = vmatpush1.bf16.msra.mxu0 0
    %1186 = vmatprep.subr.bf16.mxu0 0
    %1187 = vmatpush1.bf16.msra.mxu0 %v964
    %1188 = vmatprep.subr.bf16.mxu0 0
    %1189 = vmatpush1.bf16.msra.mxu0 %v963
    %1190 = vmatprep.subr.bf16.mxu0 0
    %1191 = vmatpush2.bf16.msra.mxu0 0
    %1192 = vmatprep.subr.bf16.mxu0 0
    %1193 = vmatpush2.bf16.msra.mxu0 0
    %1194 = vmatprep.subr.bf16.mxu0 0
    %1195 = vmatpush2.bf16.msra.mxu0 0
    %1196 = vmatprep.subr.bf16.mxu0 0
    %1197 = vmatpush2.bf16.msra.mxu0 0
    %1198 = vmatprep.subr.bf16.mxu0 0
    %1199 = vmatpush2.bf16.msra.mxu0 0
    %1200 = vmatprep.subr.bf16.mxu0 0
    %1201 = vmatpush2.bf16.msra.mxu0 0
    %1202 = vmatprep.subr.bf16.mxu0 0
    %1203 = vmatpush2.bf16.msra.mxu0 0
    %1204 = vmatprep.subr.bf16.mxu0 0
    %1205 = vmatpush2.bf16.msra.mxu0 0
    %1206 = vmatprep.mubr.bf16.mxu0 0
    %1207 = vmatmul.mubr.bf16.gmra.mxu0 %v1172
    %v1208 = vpop.f32.mrf.mxu0
    %v1209 = vadd.f32 0.0, %v1208
    %v1210 = vpop.f32.mrf.mxu0
    %v1211 = vpop.f32.mrf.mxu0
    %v1212 = vpop.f32.mrf.mxu0
    %1213 = vdwg.mxu0
    %v1214 = vadd.f32 %v1166, %v1209
    %v1215 = vtanh.pop %v1214
    %v1216 = vmul.f32 %v1215, 0.5
    %v1217 = vadd.f32 %v1216, 0.5
    %v1218 = vmul.f32 %v1217, %v1159
    %1220 = vrot.lane.b32.xlu0 %v1215, 64
    %v1221 = vpop.permute.xlu0 %1220
    %v1223 = vmul.f32 %v1217, %v1221
    %1225 = vrot.lane.b32.xlu0 %v1223, 32
    %v1226 = vpop.permute.xlu0 %1225
    %v1228 = vadd.f32 %v1218, %v1226
    %v1229 = vtanh.pop %v1228
    %1231 = vrot.lane.b32.xlu0 %v1229, 64
    %v1232 = vpop.permute.xlu0 %1231
    %v1234 = vmul.f32 %v1217, %v1232
    %v1235 = vld [vmem:[%s524] sm:$0xff]
    %v1236 = vpack.c.bf16 %v1234, %v1234
    %1238 = vrot.lane.b32.xlu0 %v1236, 32
    %v1239 = vpop.permute.xlu0 %1238
    %v1241 = vsel %vm128, %v1239, 0
    %1243 = vmatprep.subr.bf16.mxu0 0
    %1244 = vmatpush1.bf16.msra.mxu0 0
    %1245 = vmatprep.subr.bf16.mxu0 0
    %1246 = vmatpush1.bf16.msra.mxu0 0
    %1247 = vmatprep.subr.bf16.mxu0 0
    %1248 = vmatpush1.bf16.msra.mxu0 0
    %1249 = vmatprep.subr.bf16.mxu0 0
    %1250 = vmatpush1.bf16.msra.mxu0 0
    %1251 = vmatprep.subr.bf16.mxu0 0
    %1252 = vmatpush1.bf16.msra.mxu0 0
    %1253 = vmatprep.subr.bf16.mxu0 0
    %1254 = vmatpush1.bf16.msra.mxu0 0
    %1255 = vmatprep.subr.bf16.mxu0 0
    %1256 = vmatpush1.bf16.msra.mxu0 %v964
    %1257 = vmatprep.subr.bf16.mxu0 0
    %1258 = vmatpush1.bf16.msra.mxu0 %v963
    %1259 = vmatprep.subr.bf16.mxu0 0
    %1260 = vmatpush2.bf16.msra.mxu0 0
    %1261 = vmatprep.subr.bf16.mxu0 0
    %1262 = vmatpush2.bf16.msra.mxu0 0
    %1263 = vmatprep.subr.bf16.mxu0 0
    %1264 = vmatpush2.bf16.msra.mxu0 0
    %1265 = vmatprep.subr.bf16.mxu0 0
    %1266 = vmatpush2.bf16.msra.mxu0 0
    %1267 = vmatprep.subr.bf16.mxu0 0
    %1268 = vmatpush2.bf16.msra.mxu0 0
    %1269 = vmatprep.subr.bf16.mxu0 0
    %1270 = vmatpush2.bf16.msra.mxu0 0
    %1271 = vmatprep.subr.bf16.mxu0 0
    %1272 = vmatpush2.bf16.msra.mxu0 0
    %1273 = vmatprep.subr.bf16.mxu0 0
    %1274 = vmatpush2.bf16.msra.mxu0 0
    %1275 = vmatprep.mubr.bf16.mxu0 0
    %1276 = vmatmul.mubr.bf16.gmra.mxu0 %v1241
    %v1277 = vpop.f32.mrf.mxu0
    %v1278 = vadd.f32 0.0, %v1277
    %v1279 = vpop.f32.mrf.mxu0
    %v1280 = vpop.f32.mrf.mxu0
    %v1281 = vpop.f32.mrf.mxu0
    %1282 = vdwg.mxu0
    %v1283 = vadd.f32 %v1235, %v1278
    %v1284 = vtanh.pop %v1283
    %v1285 = vmul.f32 %v1284, 0.5
    %v1286 = vadd.f32 %v1285, 0.5
    %v1287 = vmul.f32 %v1286, %v1228
    %1289 = vrot.lane.b32.xlu0 %v1284, 64
    %v1290 = vpop.permute.xlu0 %1289
    %v1292 = vmul.f32 %v1286, %v1290
    %1294 = vrot.lane.b32.xlu0 %v1292, 32
    %v1295 = vpop.permute.xlu0 %1294
    %v1297 = vadd.f32 %v1287, %v1295
    %v1298 = vtanh.pop %v1297
    %1300 = vrot.lane.b32.xlu0 %v1298, 64
    %v1301 = vpop.permute.xlu0 %1300
    %v1303 = vmul.f32 %v1286, %v1301
    %v1304 = vld [vmem:[%s600] sm:$0xff]
    %v1305 = vpack.c.bf16 %v1303, %v1303
    %1307 = vrot.lane.b32.xlu0 %v1305, 32
    %v1308 = vpop.permute.xlu0 %1307
    %v1310 = vsel %vm128, %v1308, 0
    %1312 = vmatprep.subr.bf16.mxu0 0
    %1313 = vmatpush1.bf16.msra.mxu0 0
    %1314 = vmatprep.subr.bf16.mxu0 0
    %1315 = vmatpush1.bf16.msra.mxu0 0
    %1316 = vmatprep.subr.bf16.mxu0 0
    %1317 = vmatpush1.bf16.msra.mxu0 0
    %1318 = vmatprep.subr.bf16.mxu0 0
    %1319 = vmatpush1.bf16.msra.mxu0 0
    %1320 = vmatprep.subr.bf16.mxu0 0
    %1321 = vmatpush1.bf16.msra.mxu0 0
    %1322 = vmatprep.subr.bf16.mxu0 0
    %1323 = vmatpush1.bf16.msra.mxu0 0
    %1324 = vmatprep.subr.bf16.mxu0 0
    %1325 = vmatpush1.bf16.msra.mxu0 %v964
    %1326 = vmatprep.subr.bf16.mxu0 0
    %1327 = vmatpush1.bf16.msra.mxu0 %v963
    %1328 = vmatprep.subr.bf16.mxu0 0
    %1329 = vmatpush2.bf16.msra.mxu0 0
    %1330 = vmatprep.subr.bf16.mxu0 0
    %1331 = vmatpush2.bf16.msra.mxu0 0
    %1332 = vmatprep.subr.bf16.mxu0 0
    %1333 = vmatpush2.bf16.msra.mxu0 0
    %1334 = vmatprep.subr.bf16.mxu0 0
    %1335 = vmatpush2.bf16.msra.mxu0 0
    %1336 = vmatprep.subr.bf16.mxu0 0
    %1337 = vmatpush2.bf16.msra.mxu0 0
    %1338 = vmatprep.subr.bf16.mxu0 0
    %1339 = vmatpush2.bf16.msra.mxu0 0
    %1340 = vmatprep.subr.bf16.mxu0 0
    %1341 = vmatpush2.bf16.msra.mxu0 0
    %1342 = vmatprep.subr.bf16.mxu0 0
    %1343 = vmatpush2.bf16.msra.mxu0 0
    %1344 = vmatprep.mubr.bf16.mxu0 0
    %1345 = vmatmul.mubr.bf16.gmra.mxu0 %v1310
    %v1346 = vpop.f32.mrf.mxu0
    %v1347 = vadd.f32 0.0, %v1346
    %v1348 = vpop.f32.mrf.mxu0
    %v1349 = vpop.f32.mrf.mxu0
    %v1350 = vpop.f32.mrf.mxu0
    %1351 = vdwg.mxu0
    %v1352 = vadd.f32 %v1304, %v1347
    %v1353 = vtanh.pop %v1352
    %v1354 = vmul.f32 %v1353, 0.5
    %v1355 = vadd.f32 %v1354, 0.5
    %v1356 = vmul.f32 %v1355, %v1297
    %1358 = vrot.lane.b32.xlu0 %v1353, 64
    %v1359 = vpop.permute.xlu0 %1358
    %v1361 = vmul.f32 %v1355, %v1359
    %1363 = vrot.lane.b32.xlu0 %v1361, 32
    %v1364 = vpop.permute.xlu0 %1363
    %v1366 = vadd.f32 %v1356, %v1364
    %v1367 = vtanh.pop %v1366
    %1369 = vrot.lane.b32.xlu0 %v1367, 64
    %v1370 = vpop.permute.xlu0 %1369
    %v1372 = vmul.f32 %v1355, %v1370
    %v1373 = vld [vmem:[%s676] sm:$0xff]
    %v1374 = vpack.c.bf16 %v1372, %v1372
    %1376 = vrot.lane.b32.xlu0 %v1374, 32
    %v1377 = vpop.permute.xlu0 %1376
    %v1379 = vsel %vm128, %v1377, 0
    %1381 = vmatprep.subr.bf16.mxu0 0
    %1382 = vmatpush1.bf16.msra.mxu0 0
    %1383 = vmatprep.subr.bf16.mxu0 0
    %1384 = vmatpush1.bf16.msra.mxu0 0
    %1385 = vmatprep.subr.bf16.mxu0 0
    %1386 = vmatpush1.bf16.msra.mxu0 0
    %1387 = vmatprep.subr.bf16.mxu0 0
    %1388 = vmatpush1.bf16.msra.mxu0 0
    %1389 = vmatprep.subr.bf16.mxu0 0
    %1390 = vmatpush1.bf16.msra.mxu0 0
    %1391 = vmatprep.subr.bf16.mxu0 0
    %1392 = vmatpush1.bf16.msra.mxu0 0
    %1393 = vmatprep.subr.bf16.mxu0 0
    %1394 = vmatpush1.bf16.msra.mxu0 %v964
    %1395 = vmatprep.subr.bf16.mxu0 0
    %1396 = vmatpush1.bf16.msra.mxu0 %v963
    %1397 = vmatprep.subr.bf16.mxu0 0
    %1398 = vmatpush2.bf16.msra.mxu0 0
    %1399 = vmatprep.subr.bf16.mxu0 0
    %1400 = vmatpush2.bf16.msra.mxu0 0
    %1401 = vmatprep.subr.bf16.mxu0 0
    %1402 = vmatpush2.bf16.msra.mxu0 0
    %1403 = vmatprep.subr.bf16.mxu0 0
    %1404 = vmatpush2.bf16.msra.mxu0 0
    %1405 = vmatprep.subr.bf16.mxu0 0
    %1406 = vmatpush2.bf16.msra.mxu0 0
    %1407 = vmatprep.subr.bf16.mxu0 0
    %1408 = vmatpush2.bf16.msra.mxu0 0
    %1409 = vmatprep.subr.bf16.mxu0 0
    %1410 = vmatpush2.bf16.msra.mxu0 0
    %1411 = vmatprep.subr.bf16.mxu0 0
    %1412 = vmatpush2.bf16.msra.mxu0 0
    %1413 = vmatprep.mubr.bf16.mxu0 0
    %1414 = vmatmul.mubr.bf16.gmra.mxu0 %v1379
    %v1415 = vpop.f32.mrf.mxu0
    %v1416 = vadd.f32 0.0, %v1415
    %v1417 = vpop.f32.mrf.mxu0
    %v1418 = vpop.f32.mrf.mxu0
    %v1419 = vpop.f32.mrf.mxu0
    %1420 = vdwg.mxu0
    %v1421 = vadd.f32 %v1373, %v1416
    %v1422 = vtanh.pop %v1421
    %v1423 = vmul.f32 %v1422, 0.5
    %v1424 = vadd.f32 %v1423, 0.5
    %v1425 = vmul.f32 %v1424, %v1366
    %1427 = vrot.lane.b32.xlu0 %v1422, 64
    %v1428 = vpop.permute.xlu0 %1427
    %v1430 = vmul.f32 %v1424, %v1428
    %1432 = vrot.lane.b32.xlu0 %v1430, 32
    %v1433 = vpop.permute.xlu0 %1432
    %v1435 = vadd.f32 %v1425, %v1433
    %v1436 = vtanh.pop %v1435
    %1438 = vrot.lane.b32.xlu0 %v1436, 64
    %v1439 = vpop.permute.xlu0 %1438
    %v1441 = vmul.f32 %v1424, %v1439
    %v1442 = vld [vmem:[%s752] sm:$0xff]
    %v1443 = vpack.c.bf16 %v1441, %v1441
    %1445 = vrot.lane.b32.xlu0 %v1443, 32
    %v1446 = vpop.permute.xlu0 %1445
    %v1448 = vsel %vm128, %v1446, 0
    %1450 = vmatprep.subr.bf16.mxu0 0
    %1451 = vmatpush1.bf16.msra.mxu0 0
    %1452 = vmatprep.subr.bf16.mxu0 0
    %1453 = vmatpush1.bf16.msra.mxu0 0
    %1454 = vmatprep.subr.bf16.mxu0 0
    %1455 = vmatpush1.bf16.msra.mxu0 0
    %1456 = vmatprep.subr.bf16.mxu0 0
    %1457 = vmatpush1.bf16.msra.mxu0 0
    %1458 = vmatprep.subr.bf16.mxu0 0
    %1459 = vmatpush1.bf16.msra.mxu0 0
    %1460 = vmatprep.subr.bf16.mxu0 0
    %1461 = vmatpush1.bf16.msra.mxu0 0
    %1462 = vmatprep.subr.bf16.mxu0 0
    %1463 = vmatpush1.bf16.msra.mxu0 %v964
    %1464 = vmatprep.subr.bf16.mxu0 0
    %1465 = vmatpush1.bf16.msra.mxu0 %v963
    %1466 = vmatprep.subr.bf16.mxu0 0
    %1467 = vmatpush2.bf16.msra.mxu0 0
    %1468 = vmatprep.subr.bf16.mxu0 0
    %1469 = vmatpush2.bf16.msra.mxu0 0
    %1470 = vmatprep.subr.bf16.mxu0 0
    %1471 = vmatpush2.bf16.msra.mxu0 0
    %1472 = vmatprep.subr.bf16.mxu0 0
    %1473 = vmatpush2.bf16.msra.mxu0 0
    %1474 = vmatprep.subr.bf16.mxu0 0
    %1475 = vmatpush2.bf16.msra.mxu0 0
    %1476 = vmatprep.subr.bf16.mxu0 0
    %1477 = vmatpush2.bf16.msra.mxu0 0
    %1478 = vmatprep.subr.bf16.mxu0 0
    %1479 = vmatpush2.bf16.msra.mxu0 0
    %1480 = vmatprep.subr.bf16.mxu0 0
    %1481 = vmatpush2.bf16.msra.mxu0 0
    %1482 = vmatprep.mubr.bf16.mxu0 0
    %1483 = vmatmul.mubr.bf16.gmra.mxu0 %v1448
    %v1484 = vpop.f32.mrf.mxu0
    %v1485 = vadd.f32 0.0, %v1484
    %v1486 = vpop.f32.mrf.mxu0
    %v1487 = vpop.f32.mrf.mxu0
    %v1488 = vpop.f32.mrf.mxu0
    %1489 = vdwg.mxu0
    %v1490 = vadd.f32 %v1442, %v1485
    %v1491 = vtanh.pop %v1490
    %v1492 = vmul.f32 %v1491, 0.5
    %v1493 = vadd.f32 %v1492, 0.5
    %v1494 = vmul.f32 %v1493, %v1435
    %1496 = vrot.lane.b32.xlu0 %v1491, 64
    %v1497 = vpop.permute.xlu0 %1496
    %v1499 = vmul.f32 %v1493, %v1497
    %1501 = vrot.lane.b32.xlu0 %v1499, 32
    %v1502 = vpop.permute.xlu0 %1501
    %v1504 = vadd.f32 %v1494, %v1502
    %v1505 = vtanh.pop %v1504
    %1507 = vrot.lane.b32.xlu0 %v1505, 64
    %v1508 = vpop.permute.xlu0 %1507
    %v1510 = vmul.f32 %v1493, %v1508
    %1512 = vrot.lane.b32.xlu0 %v1510, 96
    %v1513 = vpop.permute.xlu0 %1512
    %vm1515 = vcmask 785920
    %1516 = vst.msk [vmem:[#allocation4] sm:$0xff] %vm1515, %v1513
    %1518 = vrot.lane.b32.xlu0 %v1504, 64
    %v1519 = vpop.permute.xlu0 %1518
    %vm1521 = vcmask 1048320
    %1522 = vst.msk [vmem:[#allocation4] sm:$0xff] %vm1521, %v1519
    %v1523 = vld [vmem:[#allocation4] sm:$0xff]
    %v1524 = vtanh.pop %v1523
    %v1525 = vld [vmem:[#allocation11] sm:$0xf]
    %v1526 = vld [vmem:[#allocation11 + $0x4] sm:$0xf]
    %v1527 = vld [vmem:[#allocation11 + $0x8] sm:$0xf]
    %v1528 = vld [vmem:[#allocation11 + $0xc] sm:$0xf]
    %v1529 = vld [vmem:[#allocation11 + $0x10] sm:$0xf]
    %v1530 = vld [vmem:[#allocation11 + $0x14] sm:$0xf]
    %v1531 = vld [vmem:[#allocation11 + $0x18] sm:$0xf]
    %v1532 = vld [vmem:[#allocation11 + $0x1c] sm:$0xf]
    %v1533 = vld [vmem:[#allocation11 + $0x20] sm:$0xf]
    %v1534 = vld [vmem:[#allocation11 + $0x24] sm:$0xf]
    %v1535 = vld [vmem:[#allocation11 + $0x28] sm:$0xf]
    %v1536 = vld [vmem:[#allocation11 + $0x2c] sm:$0xf]
    %v1537 = vld [vmem:[#allocation11 + $0x30] sm:$0xf]
    %v1538 = vld [vmem:[#allocation11 + $0x34] sm:$0xf]
    %v1539 = vld [vmem:[#allocation11 + $0x38] sm:$0xf]
    %v1540 = vld [vmem:[#allocation11 + $0x3c] sm:$0xf]
    %v1541 = vld [vmem:[#allocation11 + $0x40] sm:$0x1]
    %v1542 = vunpack.c.l.bf16 %v1541
    %v1543 = vpack.c.bf16 %v1524, %v1524
    %v1544 = vlaneseq
    %v1545 = vshrl.u32 %v1544, 7
    %v1546 = vsub.s32 0, %v1545
    %v1547 = vrot.slane %v1542, %v1546
    %v1564 = vunpack.c.l.b16 %v1525
    %v1565 = vunpack.c.l.b16 %v1526
    %v1566 = vunpack.c.l.b16 %v1527
    %v1567 = vunpack.c.l.b16 %v1528
    %v1568 = vunpack.c.l.b16 %v1529
    %v1569 = vunpack.c.l.b16 %v1530
    %v1570 = vunpack.c.l.b16 %v1531
    %v1571 = vunpack.c.l.b16 %v1532
    %v1572 = vunpack.c.l.b16 %v1533
    %v1573 = vunpack.c.l.b16 %v1534
    %v1574 = vunpack.c.l.b16 %v1535
    %v1575 = vunpack.c.l.b16 %v1536
    %v1576 = vunpack.c.l.b16 %v1537
    %v1577 = vunpack.c.l.b16 %v1538
    %v1578 = vunpack.c.l.b16 %v1539
    %v1579 = vunpack.c.l.b16 %v1540
    %v1580 = vpack.c.b16 %v1565, %v1564
    %v1581 = vpack.c.b16 %v1567, %v1566
    %v1582 = vpack.c.b16 %v1569, %v1568
    %v1583 = vpack.c.b16 %v1571, %v1570
    %v1584 = vpack.c.b16 %v1573, %v1572
    %v1585 = vpack.c.b16 %v1575, %v1574
    %v1586 = vpack.c.b16 %v1577, %v1576
    %v1587 = vpack.c.b16 %v1579, %v1578
    %1596 = vmatprep.subr.bf16.mxu0 0
    %1597 = vmatpush1.bf16.msra.mxu0 %v1587
    %1598 = vmatprep.subr.bf16.mxu0 0
    %1599 = vmatpush1.bf16.msra.mxu0 %v1586
    %1600 = vmatprep.subr.bf16.mxu0 0
    %1601 = vmatpush1.bf16.msra.mxu0 %v1585
    %1602 = vmatprep.subr.bf16.mxu0 0
    %1603 = vmatpush1.bf16.msra.mxu0 %v1584
    %1604 = vmatprep.subr.bf16.mxu0 0
    %1605 = vmatpush1.bf16.msra.mxu0 %v1583
    %1606 = vmatprep.subr.bf16.mxu0 0
    %1607 = vmatpush1.bf16.msra.mxu0 %v1582
    %1608 = vmatprep.subr.bf16.mxu0 0
    %1609 = vmatpush1.bf16.msra.mxu0 %v1581
    %1610 = vmatprep.subr.bf16.mxu0 0
    %1611 = vmatpush1.bf16.msra.mxu0 %v1580
    %1612 = vmatprep.subr.bf16.mxu0 0
    %1613 = vmatpush2.bf16.msra.mxu0 0
    %1614 = vmatprep.subr.bf16.mxu0 0
    %1615 = vmatpush2.bf16.msra.mxu0 0
    %1616 = vmatprep.subr.bf16.mxu0 0
    %1617 = vmatpush2.bf16.msra.mxu0 0
    %1618 = vmatprep.subr.bf16.mxu0 0
    %1619 = vmatpush2.bf16.msra.mxu0 0
    %1620 = vmatprep.subr.bf16.mxu0 0
    %1621 = vmatpush2.bf16.msra.mxu0 0
    %1622 = vmatprep.subr.bf16.mxu0 0
    %1623 = vmatpush2.bf16.msra.mxu0 0
    %1624 = vmatprep.subr.bf16.mxu0 0
    %1625 = vmatpush2.bf16.msra.mxu0 0
    %1626 = vmatprep.subr.bf16.mxu0 0
    %1627 = vmatpush2.bf16.msra.mxu0 0
    %1628 = vmatprep.mubr.bf16.mxu0 0
    %1629 = vmatmul.mubr.bf16.gmra.mxu0 %v1543
    %v1630 = vpop.f32.mrf.mxu0
    %v1631 = vadd.f32 %v1547, %v1630
    %v1632 = vpop.f32.mrf.mxu0
    %v1633 = vpop.f32.mrf.mxu0
    %v1634 = vpop.f32.mrf.mxu0
    %1635 = vdwg.mxu0
    %1636 = vst [vmem:[#allocation13] sm:$0xff] %v1631
    // Predicated region
    $region34: #{tpu_custom_call.1} parent=1 // pred_check
      _
    $region35: #{tpu_custom_call.1} parent=1 // pred_check_branch
      %1638 = sbr.rel (0) target = $region37
    $region36: #{tpu_custom_call.1} parent=1 // pred_region
      %s1640 = ssub.s32 128, 128
      %1641 = vsyncadd [#allocation7], %s1640
      %s1643 = sshll.u32 [#allocation13], 4
      %s1644 = int_to_ptr.vmem [resolvable:$true] %s1643
      %1646 = dma.vmem_to_hbm [thread:$0]  %s1644, 128, %s4, [#allocation7]
    $region37: #{tpu_custom_call.1} parent=1 // pred_fallthru
      _
    // Predicated region
    $region38: #{tpu_custom_call.1} parent=1 // pred_check
      _
    $region39: #{tpu_custom_call.1} parent=1 // pred_check_branch
      %1648 = sbr.rel (0) target = $region41
    $region40: #{tpu_custom_call.1} parent=1 // pred_region
      %1649 = dma.done [#allocation7], 128
    $region41: #{tpu_custom_call.1} parent=1 // pred_fallthru
      _
    %1650 = vsyncpa [#allocation6], 1
    %1651 = vsyncpa [#allocation9], 1
    %1652 = vsyncpa [#allocation12], 1
    %1653 = vsyncpa [#allocation7], 1

</llo_original>
